<compile_context>
chip_gen: v7x
topology: tpu7x:2x2x1
jax: 0.10.0
libtpu: 0.0.40
codegen_flags: <defaults>
</compile_context>

<pallas_src>
import functools

import jax
import jax.numpy as jnp
import numpy as np
from jax.experimental import pallas as pl
from jax.experimental.pallas import tpu as pltpu


def _mha_kernel(q_ref, k_ref, mrow_ref, mcol_ref, wq_ref, wk_ref, wv_ref,
                wu_ref, bu_ref, o_ref, *, heads, emb, t_q, t_k, block_b,
                causal):
    """block_b batch elements: fused projections + per-head attention + unify."""
    f32 = jnp.float32
    bf16 = jnp.bfloat16

    # ---- Q/K/V projections: one big (block_b*T, E) @ (E, H*E) MXU matmul each.
    #      The 1/sqrt(E) score scaling is already folded into Wq by the wrapper.
    q2 = q_ref[...].reshape(block_b * t_q, emb)                       # bf16
    k2 = k_ref[...].reshape(block_b * t_k, emb)                       # bf16
    q_all = jnp.dot(q2, wq_ref[...], preferred_element_type=f32).astype(bf16)
    k_all = jnp.dot(k2, wk_ref[...], preferred_element_type=f32).astype(bf16)
    v_all = jnp.dot(k2, wv_ref[...], preferred_element_type=f32).astype(bf16)

    wu = wu_ref[...]                                                  # (H*E, E) bf16
    bu = bu_ref[...]                                                  # (1, E)   f32

    for b in range(block_b):
        # ---- padding-mask condition, built once and reused by every head.
        #      Row (key) and column (query) layouts are both supplied by the
        #      wrapper, so no in-kernel transpose / XLU traffic is needed.
        mrow = mrow_ref[b]                                            # (1, T_k)
        mcol = mcol_ref[b]                                            # (T_q, 1)
        pad_masked = (mcol * mrow) == 0.0                             # (T_q, T_k) bool
        if causal:
            r = jax.lax.broadcasted_iota(jnp.int32, (t_q, t_k), 0)
            c = jax.lax.broadcasted_iota(jnp.int32, (t_q, t_k), 1)
            strict_upper = c > r
            needs_fill = jnp.logical_or(pad_masked, strict_upper)
            # padding (-1e9) overrides the causal -inf, exactly matching the
            # PyTorch masked_fill that runs *after* mask_().
            fill = jnp.where(pad_masked, -1e9, -jnp.inf).astype(f32)
        else:
            needs_fill = pad_masked
            fill = -1e9

        qb = q_all[b * t_q:(b + 1) * t_q]      # sublane slices (multiples of 8)
        kb = k_all[b * t_k:(b + 1) * t_k]
        vb = v_all[b * t_k:(b + 1) * t_k]

        # Unify projection folded into the head loop: accumulate straight into
        # a (T_q, E) f32 accumulator -> no head concat, no (T_q, H*E) buffer.
        # (For much larger head counts switch to lax.fori_loop(..., unroll=True)
        #  with acc as the carry to bound live ranges; H=8 unrolled is fine.)
        acc = jnp.zeros((t_q, emb), f32)
        for hd in range(heads):
            lo = hd * emb
            qh = qb[:, lo:lo + emb]                                   # (T_q, E)
            kh = kb[:, lo:lo + emb]                                   # (T_k, E)
            vh = vb[:, lo:lo + emb]                                   # (T_k, E)

            # scores = qh @ kh^T  ('qd,kd->qk'), f32 accumulation on the MXU
            dot = jax.lax.dot_general(qh, kh, (((1,), (1,)), ((), ())),
                                      preferred_element_type=f32)
            dot = jnp.where(needs_fill, fill, dot)

            # numerically stable softmax over keys; approx reciprocal uses the
            # EUP slot instead of a VPU divide.
            dot = dot - jnp.max(dot, axis=-1, keepdims=True)
            p = jnp.exp(dot)
            p = p * pl.reciprocal(jnp.sum(p, axis=-1, keepdims=True),
                                  approx=True)

            oh = jnp.dot(p.astype(bf16), vh, preferred_element_type=f32)
            acc = acc + jnp.dot(oh.astype(bf16), wu[lo:lo + emb, :],
                                preferred_element_type=f32)

        o_ref[b] = (acc + bu).astype(o_ref.dtype)


def multi_head_attention(q, k, mask, wq, wk, wv, wu, bu, *, heads,
                         causal=False, block_b=None):
    """q:(B,Tq,E) k:(B,Tk,E) mask:(B,Tk,1); wq/wk/wv:(E,H*E) wu:(H*E,E) bu:(1,E)."""
    b, t_q, e = q.shape
    _, t_k, _ = k.shape
    if t_q != t_k:
        # The PyTorch module's mask outer product / asserts require t_q == t_k.
        raise ValueError("MultiHeadAttention mask semantics require t_q == t_k")
    he = heads * e

    if block_b is None:
        # Tile several batch elements per grid step, but keep >= 2 grid steps
        # so both v7x TensorCores can be used via "parallel" semantics.
        if b <= 1:
            block_b = 1
        else:
            block_b = max(d for d in range(1, b // 2 + 1) if b % d == 0)
    grid_b = b // block_b

    # Fold (q / e**0.25) . (k / e**0.25)  ==  q (Wq * e**-0.5) . k Wk  into Wq.
    wq_bf = (wq * (e ** -0.5)).astype(jnp.bfloat16)
    wk_bf = wk.astype(jnp.bfloat16)
    wv_bf = wv.astype(jnp.bfloat16)
    wu_bf = wu.astype(jnp.bfloat16)

    # bf16 activations into the MXU (f32 accumulation happens in-kernel).
    q_bf = q.astype(jnp.bfloat16)
    k_bf = k.astype(jnp.bfloat16)

    # Same padding mask in two layouts so the kernel never transposes:
    # (B, 1, T_k) key-mask row and (B, T_q, 1) query-mask column.
    mask_row = mask.reshape(b, 1, t_k)
    mask_col = mask.reshape(b, t_q, 1)

    kernel = functools.partial(_mha_kernel, heads=heads, emb=e, t_q=t_q,
                               t_k=t_k, block_b=block_b, causal=causal)

    # TODO(synk): for large T this should become a flash-style K-tiled kernel
    # (online softmax) so the full (T_q, T_k) scores never materialize; at the
    # shapes used here everything fits VMEM comfortably.
    return pl.pallas_call(
        kernel,
        out_shape=jax.ShapeDtypeStruct((b, t_q, e), jnp.float32),
        grid_spec=pltpu.PrefetchScalarGridSpec(
            num_scalar_prefetch=0,
            grid=(grid_b,),
            in_specs=[
                pl.BlockSpec((block_b, t_q, e), lambda i: (i, 0, 0)),   # q
                pl.BlockSpec((block_b, t_k, e), lambda i: (i, 0, 0)),   # k
                pl.BlockSpec((block_b, 1, t_k), lambda i: (i, 0, 0)),   # key mask row
                pl.BlockSpec((block_b, t_q, 1), lambda i: (i, 0, 0)),   # query mask col
                pl.BlockSpec((e, he), lambda i: (0, 0)),                # Wq (scaled)
                pl.BlockSpec((e, he), lambda i: (0, 0)),                # Wk
                pl.BlockSpec((e, he), lambda i: (0, 0)),                # Wv
                pl.BlockSpec((he, e), lambda i: (0, 0)),                # Wu
                pl.BlockSpec((1, e), lambda i: (0, 0)),                 # bu
            ],
            out_specs=pl.BlockSpec((block_b, t_q, e), lambda i: (i, 0, 0)),
        ),
        compiler_params=pltpu.CompilerParams(
            dimension_semantics=("parallel",),
            vmem_limit_bytes=32 * 1024 * 1024,
        ),
    )(q_bf, k_bf, mask_row, mask_col, wq_bf, wk_bf, wv_bf, wu_bf, bu)


def _reference(q, k, mask, wq_t, wk_t, wv_t, wu_t, bu, heads):
    """Pure-JAX f32 transcription of the PyTorch forward (correctness check)."""
    b, t, e = q.shape
    h = heads
    keys = (k @ wk_t.T).reshape(b, t, h, e)
    values = (k @ wv_t.T).reshape(b, t, h, e)
    queries = (q @ wq_t.T).reshape(b, t, h, e)
    keys = jnp.transpose(keys, (0, 2, 1, 3)).reshape(b * h, t, e)
    values = jnp.transpose(values, (0, 2, 1, 3)).reshape(b * h, t, e)
    queries = jnp.transpose(queries, (0, 2, 1, 3)).reshape(b * h, t, e)
    mvec = jnp.broadcast_to(mask[:, None, :, :], (b, h, t, 1)).reshape(b * h, t, 1)
    scale = e ** 0.25
    dot = jnp.einsum('bqe,bke->bqk', queries / scale, keys / scale)
    mm = mvec @ jnp.transpose(mvec, (0, 2, 1))
    dot = jnp.where(mm == 0, -1e9, dot)
    p = jax.nn.softmax(dot, axis=2)
    out = jnp.einsum('bqk,bke->bqe', p, values).reshape(b, h, t, e)
    out = jnp.transpose(out, (0, 2, 1, 3)).reshape(b, t, h * e)
    return out @ wu_t.T + bu.reshape(e)


if __name__ == "__main__":
    B, T, E, H = 2, 8, 32, 8          # batch, seq (t_q == t_k), emb, heads

    key = jax.random.PRNGKey(0)
    ks = jax.random.split(key, 8)

    # Deterministic parameter init; PyTorch Linear weight shapes are (out, in).
    wq_t = jax.random.normal(ks[0], (H * E, E), jnp.float32) * 0.05   # toqueries
    wk_t = jax.random.normal(ks[1], (H * E, E), jnp.float32) * 0.05   # tokeys
    wv_t = jax.random.normal(ks[2], (H * E, E), jnp.float32) * 0.05   # tovalues
    wu_t = jax.random.normal(ks[3], (E, H * E), jnp.float32) * 0.05   # unifyheads
    bu = jax.random.normal(ks[4], (1, E), jnp.float32) * 0.05

    q = jax.random.normal(ks[5], (B, T, E), jnp.float32)
    k = jax.random.normal(ks[6], (B, T, E), jnp.float32)
    mask = (jax.random.uniform(ks[7], (B, T, 1)) > 0.3).astype(jnp.float32)

    out = multi_head_attention(
        q, k, mask,
        wq_t.T, wk_t.T, wv_t.T,   # (E, H*E)
        wu_t.T,                   # (H*E, E)
        bu,
        heads=H, causal=False)
    out = jax.block_until_ready(out)

    ref = _reference(q, k, mask, wq_t, wk_t, wv_t, wu_t, bu, H)
    # bf16 MXU operands (f32 accumulation) vs the f32 reference.
    np.testing.assert_allclose(np.asarray(out), np.asarray(ref),
                               rtol=2e-2, atol=1e-2)

    print("KERNEL_OK")
</pallas_src>

<mosaic_0001>
module attributes {stable_mosaic.version = 11 : i64} {
  func.func @_mha_kernel(%arg0: i32, %arg1: memref<1x8x32xbf16, #tpu.memory_space<vmem>>, %arg2: memref<1x8x32xbf16, #tpu.memory_space<vmem>>, %arg3: memref<1x1x8xf32, #tpu.memory_space<vmem>>, %arg4: memref<1x8x1xf32, #tpu.memory_space<vmem>>, %arg5: memref<32x256xbf16, #tpu.memory_space<vmem>>, %arg6: memref<32x256xbf16, #tpu.memory_space<vmem>>, %arg7: memref<32x256xbf16, #tpu.memory_space<vmem>>, %arg8: memref<256x32xbf16, #tpu.memory_space<vmem>>, %arg9: memref<1x32xf32, #tpu.memory_space<vmem>>, %arg10: memref<1x8x32xf32, #tpu.memory_space<vmem>>) attributes {dimension_semantics = [#tpu.dimension_semantics<parallel>], iteration_bounds = array<i64: 2>, scalar_prefetch = 0 : i64, scratch_operands = 0 : i64, tpu.core_type = #tpu.core_type<tc>, window_params = [{transform_indices = @transform_0, window_bounds = array<i64: 1, 8, 32>}, {transform_indices = @transform_1, window_bounds = array<i64: 1, 8, 32>}, {transform_indices = @transform_2, window_bounds = array<i64: 1, 1, 8>}, {transform_indices = @transform_3, window_bounds = array<i64: 1, 8, 1>}, {pipeline_mode = #tpu.pipeline_mode<synchronous>, transform_indices = @transform_4, window_bounds = array<i64: 32, 256>}, {pipeline_mode = #tpu.pipeline_mode<synchronous>, transform_indices = @transform_5, window_bounds = array<i64: 32, 256>}, {pipeline_mode = #tpu.pipeline_mode<synchronous>, transform_indices = @transform_6, window_bounds = array<i64: 32, 256>}, {pipeline_mode = #tpu.pipeline_mode<synchronous>, transform_indices = @transform_7, window_bounds = array<i64: 256, 32>}, {pipeline_mode = #tpu.pipeline_mode<synchronous>, transform_indices = @transform_8, window_bounds = array<i64: 1, 32>}, {transform_indices = @transform_9, window_bounds = array<i64: 1, 8, 32>}]} {
    %c0 = arith.constant 0 : index
    %c0_0 = arith.constant 0 : index
    %c0_1 = arith.constant 0 : index
    %0 = vector.load %arg1[%c0, %c0_0, %c0_1] : memref<1x8x32xbf16, #tpu.memory_space<vmem>>, vector<1x8x32xbf16>
    %1 = vector.shape_cast %0 : vector<1x8x32xbf16> to vector<8x32xbf16>
    %c0_2 = arith.constant 0 : index
    %c0_3 = arith.constant 0 : index
    %c0_4 = arith.constant 0 : index
    %2 = vector.load %arg2[%c0_2, %c0_3, %c0_4] : memref<1x8x32xbf16, #tpu.memory_space<vmem>>, vector<1x8x32xbf16>
    %3 = vector.shape_cast %2 : vector<1x8x32xbf16> to vector<8x32xbf16>
    %c0_5 = arith.constant 0 : index
    %c0_6 = arith.constant 0 : index
    %4 = vector.load %arg5[%c0_5, %c0_6] : memref<32x256xbf16, #tpu.memory_space<vmem>>, vector<32x256xbf16>
    %cst = arith.constant dense<0.000000e+00> : vector<8x256xf32>
    %5 = tpu.matmul %1, %4, %cst {dimension_numbers = #tpu.dot_dimension_numbers<[1], [0], [0], [1], [0, 0, 1, 1], [], []>} : vector<8x32xbf16>, vector<32x256xbf16>, vector<8x256xf32> -> vector<8x256xf32>
    %6 = arith.truncf %5 : vector<8x256xf32> to vector<8x256xbf16>
    %c0_7 = arith.constant 0 : index
    %c0_8 = arith.constant 0 : index
    %7 = vector.load %arg6[%c0_7, %c0_8] : memref<32x256xbf16, #tpu.memory_space<vmem>>, vector<32x256xbf16>
    %cst_9 = arith.constant dense<0.000000e+00> : vector<8x256xf32>
    %8 = tpu.matmul %3, %7, %cst_9 {dimension_numbers = #tpu.dot_dimension_numbers<[1], [0], [0], [1], [0, 0, 1, 1], [], []>} : vector<8x32xbf16>, vector<32x256xbf16>, vector<8x256xf32> -> vector<8x256xf32>
    %9 = arith.truncf %8 : vector<8x256xf32> to vector<8x256xbf16>
    %c0_10 = arith.constant 0 : index
    %c0_11 = arith.constant 0 : index
    %10 = vector.load %arg7[%c0_10, %c0_11] : memref<32x256xbf16, #tpu.memory_space<vmem>>, vector<32x256xbf16>
    %cst_12 = arith.constant dense<0.000000e+00> : vector<8x256xf32>
    %11 = tpu.matmul %3, %10, %cst_12 {dimension_numbers = #tpu.dot_dimension_numbers<[1], [0], [0], [1], [0, 0, 1, 1], [], []>} : vector<8x32xbf16>, vector<32x256xbf16>, vector<8x256xf32> -> vector<8x256xf32>
    %12 = arith.truncf %11 : vector<8x256xf32> to vector<8x256xbf16>
    %c0_13 = arith.constant 0 : index
    %c0_14 = arith.constant 0 : index
    %13 = vector.load %arg8[%c0_13, %c0_14] : memref<256x32xbf16, #tpu.memory_space<vmem>>, vector<256x32xbf16>
    %c0_15 = arith.constant 0 : index
    %c0_16 = arith.constant 0 : index
    %14 = vector.load %arg9[%c0_15, %c0_16] : memref<1x32xf32, #tpu.memory_space<vmem>>, vector<1x32xf32>
    %c0_17 = arith.constant 0 : index
    %c0_18 = arith.constant 0 : index
    %c0_19 = arith.constant 0 : index
    %15 = vector.load %arg3[%c0_17, %c0_18, %c0_19] : memref<1x1x8xf32, #tpu.memory_space<vmem>>, vector<1x1x8xf32>
    %16 = vector.shape_cast %15 : vector<1x1x8xf32> to vector<1x8xf32>
    %c0_20 = arith.constant 0 : index
    %c0_21 = arith.constant 0 : index
    %c0_22 = arith.constant 0 : index
    %17 = vector.load %arg4[%c0_20, %c0_21, %c0_22] : memref<1x8x1xf32, #tpu.memory_space<vmem>>, vector<1x8x1xf32>
    %18 = vector.shape_cast %17 : vector<1x8x1xf32> to vector<8x1xf32>
    %19 = vector.broadcast %18 : vector<8x1xf32> to vector<8x8xf32>
    %20 = vector.broadcast %16 : vector<1x8xf32> to vector<8x8xf32>
    %21 = arith.mulf %19, %20 : vector<8x8xf32>
    %cst_23 = arith.constant 0.000000e+00 : f32
    %22 = vector.broadcast %cst_23 : f32 to vector<8x8xf32>
    %23 = arith.cmpf oeq, %21, %22 : vector<8x8xf32>
    %cst_24 = arith.constant 0.000000e+00 : f32
    %24 = vector.broadcast %cst_24 : f32 to vector<8x32xf32>
    %25 = vector.extract_strided_slice %6 {offsets = [0, 0], sizes = [8, 32], strides = [1, 1]} : vector<8x256xbf16> to vector<8x32xbf16>
    %26 = vector.extract_strided_slice %9 {offsets = [0, 0], sizes = [8, 32], strides = [1, 1]} : vector<8x256xbf16> to vector<8x32xbf16>
    %27 = vector.extract_strided_slice %12 {offsets = [0, 0], sizes = [8, 32], strides = [1, 1]} : vector<8x256xbf16> to vector<8x32xbf16>
    %cst_25 = arith.constant dense<0.000000e+00> : vector<8x8xf32>
    %28 = tpu.matmul %25, %26, %cst_25 {dimension_numbers = #tpu.dot_dimension_numbers<[1], [1], [0], [0], [0, 0, 1, 0], [], []>} : vector<8x32xbf16>, vector<8x32xbf16>, vector<8x8xf32> -> vector<8x8xf32>
    %cst_26 = arith.constant -1.000000e+09 : f32
    %29 = vector.broadcast %cst_26 : f32 to vector<8x8xf32>
    %30 = arith.select %23, %29, %28 : vector<8x8xi1>, vector<8x8xf32>
    %cst_27 = arith.constant dense<0xFF800000> : vector<8xf32>
    %31 = vector.multi_reduction <maximumf>, %30, %cst_27 [1] : vector<8x8xf32> to vector<8xf32>
    %32 = vector.shape_cast %31 : vector<8xf32> to vector<8x1xf32>
    %33 = vector.broadcast %32 : vector<8x1xf32> to vector<8x8xf32>
    %34 = arith.subf %30, %33 : vector<8x8xf32>
    %35 = math.exp %34 : vector<8x8xf32>
    %cst_28 = arith.constant dense<0.000000e+00> : vector<8xf32>
    %36 = vector.multi_reduction <add>, %35, %cst_28 [1] : vector<8x8xf32> to vector<8xf32>
    %37 = vector.shape_cast %36 : vector<8xf32> to vector<8x1xf32>
    %38 = tpu.reciprocal %37 {approx = true} : vector<8x1xf32> -> vector<8x1xf32>
    %39 = vector.broadcast %38 : vector<8x1xf32> to vector<8x8xf32>
    %40 = arith.mulf %35, %39 : vector<8x8xf32>
    %41 = arith.truncf %40 : vector<8x8xf32> to vector<8x8xbf16>
    %cst_29 = arith.constant dense<0.000000e+00> : vector<8x32xf32>
    %42 = tpu.matmul %41, %27, %cst_29 {dimension_numbers = #tpu.dot_dimension_numbers<[1], [0], [0], [1], [0, 0, 1, 1], [], []>} : vector<8x8xbf16>, vector<8x32xbf16>, vector<8x32xf32> -> vector<8x32xf32>
    %43 = arith.truncf %42 : vector<8x32xf32> to vector<8x32xbf16>
    %44 = vector.extract_strided_slice %13 {offsets = [0, 0], sizes = [32, 32], strides = [1, 1]} : vector<256x32xbf16> to vector<32x32xbf16>
    %cst_30 = arith.constant dense<0.000000e+00> : vector<8x32xf32>
    %45 = tpu.matmul %43, %44, %cst_30 {dimension_numbers = #tpu.dot_dimension_numbers<[1], [0], [0], [1], [0, 0, 1, 1], [], []>} : vector<8x32xbf16>, vector<32x32xbf16>, vector<8x32xf32> -> vector<8x32xf32>
    %46 = arith.addf %24, %45 : vector<8x32xf32>
    %47 = vector.extract_strided_slice %6 {offsets = [0, 32], sizes = [8, 32], strides = [1, 1]} : vector<8x256xbf16> to vector<8x32xbf16>
    %48 = vector.extract_strided_slice %9 {offsets = [0, 32], sizes = [8, 32], strides = [1, 1]} : vector<8x256xbf16> to vector<8x32xbf16>
    %49 = vector.extract_strided_slice %12 {offsets = [0, 32], sizes = [8, 32], strides = [1, 1]} : vector<8x256xbf16> to vector<8x32xbf16>
    %cst_31 = arith.constant dense<0.000000e+00> : vector<8x8xf32>
    %50 = tpu.matmul %47, %48, %cst_31 {dimension_numbers = #tpu.dot_dimension_numbers<[1], [1], [0], [0], [0, 0, 1, 0], [], []>} : vector<8x32xbf16>, vector<8x32xbf16>, vector<8x8xf32> -> vector<8x8xf32>
    %cst_32 = arith.constant -1.000000e+09 : f32
    %51 = vector.broadcast %cst_32 : f32 to vector<8x8xf32>
    %52 = arith.select %23, %51, %50 : vector<8x8xi1>, vector<8x8xf32>
    %cst_33 = arith.constant dense<0xFF800000> : vector<8xf32>
    %53 = vector.multi_reduction <maximumf>, %52, %cst_33 [1] : vector<8x8xf32> to vector<8xf32>
    %54 = vector.shape_cast %53 : vector<8xf32> to vector<8x1xf32>
    %55 = vector.broadcast %54 : vector<8x1xf32> to vector<8x8xf32>
    %56 = arith.subf %52, %55 : vector<8x8xf32>
    %57 = math.exp %56 : vector<8x8xf32>
    %cst_34 = arith.constant dense<0.000000e+00> : vector<8xf32>
    %58 = vector.multi_reduction <add>, %57, %cst_34 [1] : vector<8x8xf32> to vector<8xf32>
    %59 = vector.shape_cast %58 : vector<8xf32> to vector<8x1xf32>
    %60 = tpu.reciprocal %59 {approx = true} : vector<8x1xf32> -> vector<8x1xf32>
    %61 = vector.broadcast %60 : vector<8x1xf32> to vector<8x8xf32>
    %62 = arith.mulf %57, %61 : vector<8x8xf32>
    %63 = arith.truncf %62 : vector<8x8xf32> to vector<8x8xbf16>
    %cst_35 = arith.constant dense<0.000000e+00> : vector<8x32xf32>
    %64 = tpu.matmul %63, %49, %cst_35 {dimension_numbers = #tpu.dot_dimension_numbers<[1], [0], [0], [1], [0, 0, 1, 1], [], []>} : vector<8x8xbf16>, vector<8x32xbf16>, vector<8x32xf32> -> vector<8x32xf32>
    %65 = arith.truncf %64 : vector<8x32xf32> to vector<8x32xbf16>
    %66 = vector.extract_strided_slice %13 {offsets = [32, 0], sizes = [32, 32], strides = [1, 1]} : vector<256x32xbf16> to vector<32x32xbf16>
    %cst_36 = arith.constant dense<0.000000e+00> : vector<8x32xf32>
    %67 = tpu.matmul %65, %66, %cst_36 {dimension_numbers = #tpu.dot_dimension_numbers<[1], [0], [0], [1], [0, 0, 1, 1], [], []>} : vector<8x32xbf16>, vector<32x32xbf16>, vector<8x32xf32> -> vector<8x32xf32>
    %68 = arith.addf %46, %67 : vector<8x32xf32>
    %69 = vector.extract_strided_slice %6 {offsets = [0, 64], sizes = [8, 32], strides = [1, 1]} : vector<8x256xbf16> to vector<8x32xbf16>
    %70 = vector.extract_strided_slice %9 {offsets = [0, 64], sizes = [8, 32], strides = [1, 1]} : vector<8x256xbf16> to vector<8x32xbf16>
    %71 = vector.extract_strided_slice %12 {offsets = [0, 64], sizes = [8, 32], strides = [1, 1]} : vector<8x256xbf16> to vector<8x32xbf16>
    %cst_37 = arith.constant dense<0.000000e+00> : vector<8x8xf32>
    %72 = tpu.matmul %69, %70, %cst_37 {dimension_numbers = #tpu.dot_dimension_numbers<[1], [1], [0], [0], [0, 0, 1, 0], [], []>} : vector<8x32xbf16>, vector<8x32xbf16>, vector<8x8xf32> -> vector<8x8xf32>
    %cst_38 = arith.constant -1.000000e+09 : f32
    %73 = vector.broadcast %cst_38 : f32 to vector<8x8xf32>
    %74 = arith.select %23, %73, %72 : vector<8x8xi1>, vector<8x8xf32>
    %cst_39 = arith.constant dense<0xFF800000> : vector<8xf32>
    %75 = vector.multi_reduction <maximumf>, %74, %cst_39 [1] : vector<8x8xf32> to vector<8xf32>
    %76 = vector.shape_cast %75 : vector<8xf32> to vector<8x1xf32>
    %77 = vector.broadcast %76 : vector<8x1xf32> to vector<8x8xf32>
    %78 = arith.subf %74, %77 : vector<8x8xf32>
    %79 = math.exp %78 : vector<8x8xf32>
    %cst_40 = arith.constant dense<0.000000e+00> : vector<8xf32>
    %80 = vector.multi_reduction <add>, %79, %cst_40 [1] : vector<8x8xf32> to vector<8xf32>
    %81 = vector.shape_cast %80 : vector<8xf32> to vector<8x1xf32>
    %82 = tpu.reciprocal %81 {approx = true} : vector<8x1xf32> -> vector<8x1xf32>
    %83 = vector.broadcast %82 : vector<8x1xf32> to vector<8x8xf32>
    %84 = arith.mulf %79, %83 : vector<8x8xf32>
    %85 = arith.truncf %84 : vector<8x8xf32> to vector<8x8xbf16>
    %cst_41 = arith.constant dense<0.000000e+00> : vector<8x32xf32>
    %86 = tpu.matmul %85, %71, %cst_41 {dimension_numbers = #tpu.dot_dimension_numbers<[1], [0], [0], [1], [0, 0, 1, 1], [], []>} : vector<8x8xbf16>, vector<8x32xbf16>, vector<8x32xf32> -> vector<8x32xf32>
    %87 = arith.truncf %86 : vector<8x32xf32> to vector<8x32xbf16>
    %88 = vector.extract_strided_slice %13 {offsets = [64, 0], sizes = [32, 32], strides = [1, 1]} : vector<256x32xbf16> to vector<32x32xbf16>
    %cst_42 = arith.constant dense<0.000000e+00> : vector<8x32xf32>
    %89 = tpu.matmul %87, %88, %cst_42 {dimension_numbers = #tpu.dot_dimension_numbers<[1], [0], [0], [1], [0, 0, 1, 1], [], []>} : vector<8x32xbf16>, vector<32x32xbf16>, vector<8x32xf32> -> vector<8x32xf32>
    %90 = arith.addf %68, %89 : vector<8x32xf32>
    %91 = vector.extract_strided_slice %6 {offsets = [0, 96], sizes = [8, 32], strides = [1, 1]} : vector<8x256xbf16> to vector<8x32xbf16>
    %92 = vector.extract_strided_slice %9 {offsets = [0, 96], sizes = [8, 32], strides = [1, 1]} : vector<8x256xbf16> to vector<8x32xbf16>
    %93 = vector.extract_strided_slice %12 {offsets = [0, 96], sizes = [8, 32], strides = [1, 1]} : vector<8x256xbf16> to vector<8x32xbf16>
    %cst_43 = arith.constant dense<0.000000e+00> : vector<8x8xf32>
    %94 = tpu.matmul %91, %92, %cst_43 {dimension_numbers = #tpu.dot_dimension_numbers<[1], [1], [0], [0], [0, 0, 1, 0], [], []>} : vector<8x32xbf16>, vector<8x32xbf16>, vector<8x8xf32> -> vector<8x8xf32>
    %cst_44 = arith.constant -1.000000e+09 : f32
    %95 = vector.broadcast %cst_44 : f32 to vector<8x8xf32>
    %96 = arith.select %23, %95, %94 : vector<8x8xi1>, vector<8x8xf32>
    %cst_45 = arith.constant dense<0xFF800000> : vector<8xf32>
    %97 = vector.multi_reduction <maximumf>, %96, %cst_45 [1] : vector<8x8xf32> to vector<8xf32>
    %98 = vector.shape_cast %97 : vector<8xf32> to vector<8x1xf32>
    %99 = vector.broadcast %98 : vector<8x1xf32> to vector<8x8xf32>
    %100 = arith.subf %96, %99 : vector<8x8xf32>
    %101 = math.exp %100 : vector<8x8xf32>
    %cst_46 = arith.constant dense<0.000000e+00> : vector<8xf32>
    %102 = vector.multi_reduction <add>, %101, %cst_46 [1] : vector<8x8xf32> to vector<8xf32>
    %103 = vector.shape_cast %102 : vector<8xf32> to vector<8x1xf32>
    %104 = tpu.reciprocal %103 {approx = true} : vector<8x1xf32> -> vector<8x1xf32>
    %105 = vector.broadcast %104 : vector<8x1xf32> to vector<8x8xf32>
    %106 = arith.mulf %101, %105 : vector<8x8xf32>
    %107 = arith.truncf %106 : vector<8x8xf32> to vector<8x8xbf16>
    %cst_47 = arith.constant dense<0.000000e+00> : vector<8x32xf32>
    %108 = tpu.matmul %107, %93, %cst_47 {dimension_numbers = #tpu.dot_dimension_numbers<[1], [0], [0], [1], [0, 0, 1, 1], [], []>} : vector<8x8xbf16>, vector<8x32xbf16>, vector<8x32xf32> -> vector<8x32xf32>
    %109 = arith.truncf %108 : vector<8x32xf32> to vector<8x32xbf16>
    %110 = vector.extract_strided_slice %13 {offsets = [96, 0], sizes = [32, 32], strides = [1, 1]} : vector<256x32xbf16> to vector<32x32xbf16>
    %cst_48 = arith.constant dense<0.000000e+00> : vector<8x32xf32>
    %111 = tpu.matmul %109, %110, %cst_48 {dimension_numbers = #tpu.dot_dimension_numbers<[1], [0], [0], [1], [0, 0, 1, 1], [], []>} : vector<8x32xbf16>, vector<32x32xbf16>, vector<8x32xf32> -> vector<8x32xf32>
    %112 = arith.addf %90, %111 : vector<8x32xf32>
    %113 = vector.extract_strided_slice %6 {offsets = [0, 128], sizes = [8, 32], strides = [1, 1]} : vector<8x256xbf16> to vector<8x32xbf16>
    %114 = vector.extract_strided_slice %9 {offsets = [0, 128], sizes = [8, 32], strides = [1, 1]} : vector<8x256xbf16> to vector<8x32xbf16>
    %115 = vector.extract_strided_slice %12 {offsets = [0, 128], sizes = [8, 32], strides = [1, 1]} : vector<8x256xbf16> to vector<8x32xbf16>
    %cst_49 = arith.constant dense<0.000000e+00> : vector<8x8xf32>
    %116 = tpu.matmul %113, %114, %cst_49 {dimension_numbers = #tpu.dot_dimension_numbers<[1], [1], [0], [0], [0, 0, 1, 0], [], []>} : vector<8x32xbf16>, vector<8x32xbf16>, vector<8x8xf32> -> vector<8x8xf32>
    %cst_50 = arith.constant -1.000000e+09 : f32
    %117 = vector.broadcast %cst_50 : f32 to vector<8x8xf32>
    %118 = arith.select %23, %117, %116 : vector<8x8xi1>, vector<8x8xf32>
    %cst_51 = arith.constant dense<0xFF800000> : vector<8xf32>
    %119 = vector.multi_reduction <maximumf>, %118, %cst_51 [1] : vector<8x8xf32> to vector<8xf32>
    %120 = vector.shape_cast %119 : vector<8xf32> to vector<8x1xf32>
    %121 = vector.broadcast %120 : vector<8x1xf32> to vector<8x8xf32>
    %122 = arith.subf %118, %121 : vector<8x8xf32>
    %123 = math.exp %122 : vector<8x8xf32>
    %cst_52 = arith.constant dense<0.000000e+00> : vector<8xf32>
    %124 = vector.multi_reduction <add>, %123, %cst_52 [1] : vector<8x8xf32> to vector<8xf32>
    %125 = vector.shape_cast %124 : vector<8xf32> to vector<8x1xf32>
    %126 = tpu.reciprocal %125 {approx = true} : vector<8x1xf32> -> vector<8x1xf32>
    %127 = vector.broadcast %126 : vector<8x1xf32> to vector<8x8xf32>
    %128 = arith.mulf %123, %127 : vector<8x8xf32>
    %129 = arith.truncf %128 : vector<8x8xf32> to vector<8x8xbf16>
    %cst_53 = arith.constant dense<0.000000e+00> : vector<8x32xf32>
    %130 = tpu.matmul %129, %115, %cst_53 {dimension_numbers = #tpu.dot_dimension_numbers<[1], [0], [0], [1], [0, 0, 1, 1], [], []>} : vector<8x8xbf16>, vector<8x32xbf16>, vector<8x32xf32> -> vector<8x32xf32>
    %131 = arith.truncf %130 : vector<8x32xf32> to vector<8x32xbf16>
    %132 = vector.extract_strided_slice %13 {offsets = [128, 0], sizes = [32, 32], strides = [1, 1]} : vector<256x32xbf16> to vector<32x32xbf16>
    %cst_54 = arith.constant dense<0.000000e+00> : vector<8x32xf32>
    %133 = tpu.matmul %131, %132, %cst_54 {dimension_numbers = #tpu.dot_dimension_numbers<[1], [0], [0], [1], [0, 0, 1, 1], [], []>} : vector<8x32xbf16>, vector<32x32xbf16>, vector<8x32xf32> -> vector<8x32xf32>
    %134 = arith.addf %112, %133 : vector<8x32xf32>
    %135 = vector.extract_strided_slice %6 {offsets = [0, 160], sizes = [8, 32], strides = [1, 1]} : vector<8x256xbf16> to vector<8x32xbf16>
    %136 = vector.extract_strided_slice %9 {offsets = [0, 160], sizes = [8, 32], strides = [1, 1]} : vector<8x256xbf16> to vector<8x32xbf16>
    %137 = vector.extract_strided_slice %12 {offsets = [0, 160], sizes = [8, 32], strides = [1, 1]} : vector<8x256xbf16> to vector<8x32xbf16>
    %cst_55 = arith.constant dense<0.000000e+00> : vector<8x8xf32>
    %138 = tpu.matmul %135, %136, %cst_55 {dimension_numbers = #tpu.dot_dimension_numbers<[1], [1], [0], [0], [0, 0, 1, 0], [], []>} : vector<8x32xbf16>, vector<8x32xbf16>, vector<8x8xf32> -> vector<8x8xf32>
    %cst_56 = arith.constant -1.000000e+09 : f32
    %139 = vector.broadcast %cst_56 : f32 to vector<8x8xf32>
    %140 = arith.select %23, %139, %138 : vector<8x8xi1>, vector<8x8xf32>
    %cst_57 = arith.constant dense<0xFF800000> : vector<8xf32>
    %141 = vector.multi_reduction <maximumf>, %140, %cst_57 [1] : vector<8x8xf32> to vector<8xf32>
    %142 = vector.shape_cast %141 : vector<8xf32> to vector<8x1xf32>
    %143 = vector.broadcast %142 : vector<8x1xf32> to vector<8x8xf32>
    %144 = arith.subf %140, %143 : vector<8x8xf32>
    %145 = math.exp %144 : vector<8x8xf32>
    %cst_58 = arith.constant dense<0.000000e+00> : vector<8xf32>
    %146 = vector.multi_reduction <add>, %145, %cst_58 [1] : vector<8x8xf32> to vector<8xf32>
    %147 = vector.shape_cast %146 : vector<8xf32> to vector<8x1xf32>
    %148 = tpu.reciprocal %147 {approx = true} : vector<8x1xf32> -> vector<8x1xf32>
    %149 = vector.broadcast %148 : vector<8x1xf32> to vector<8x8xf32>
    %150 = arith.mulf %145, %149 : vector<8x8xf32>
    %151 = arith.truncf %150 : vector<8x8xf32> to vector<8x8xbf16>
    %cst_59 = arith.constant dense<0.000000e+00> : vector<8x32xf32>
    %152 = tpu.matmul %151, %137, %cst_59 {dimension_numbers = #tpu.dot_dimension_numbers<[1], [0], [0], [1], [0, 0, 1, 1], [], []>} : vector<8x8xbf16>, vector<8x32xbf16>, vector<8x32xf32> -> vector<8x32xf32>
    %153 = arith.truncf %152 : vector<8x32xf32> to vector<8x32xbf16>
    %154 = vector.extract_strided_slice %13 {offsets = [160, 0], sizes = [32, 32], strides = [1, 1]} : vector<256x32xbf16> to vector<32x32xbf16>
    %cst_60 = arith.constant dense<0.000000e+00> : vector<8x32xf32>
    %155 = tpu.matmul %153, %154, %cst_60 {dimension_numbers = #tpu.dot_dimension_numbers<[1], [0], [0], [1], [0, 0, 1, 1], [], []>} : vector<8x32xbf16>, vector<32x32xbf16>, vector<8x32xf32> -> vector<8x32xf32>
    %156 = arith.addf %134, %155 : vector<8x32xf32>
    %157 = vector.extract_strided_slice %6 {offsets = [0, 192], sizes = [8, 32], strides = [1, 1]} : vector<8x256xbf16> to vector<8x32xbf16>
    %158 = vector.extract_strided_slice %9 {offsets = [0, 192], sizes = [8, 32], strides = [1, 1]} : vector<8x256xbf16> to vector<8x32xbf16>
    %159 = vector.extract_strided_slice %12 {offsets = [0, 192], sizes = [8, 32], strides = [1, 1]} : vector<8x256xbf16> to vector<8x32xbf16>
    %cst_61 = arith.constant dense<0.000000e+00> : vector<8x8xf32>
    %160 = tpu.matmul %157, %158, %cst_61 {dimension_numbers = #tpu.dot_dimension_numbers<[1], [1], [0], [0], [0, 0, 1, 0], [], []>} : vector<8x32xbf16>, vector<8x32xbf16>, vector<8x8xf32> -> vector<8x8xf32>
    %cst_62 = arith.constant -1.000000e+09 : f32
    %161 = vector.broadcast %cst_62 : f32 to vector<8x8xf32>
    %162 = arith.select %23, %161, %160 : vector<8x8xi1>, vector<8x8xf32>
    %cst_63 = arith.constant dense<0xFF800000> : vector<8xf32>
    %163 = vector.multi_reduction <maximumf>, %162, %cst_63 [1] : vector<8x8xf32> to vector<8xf32>
    %164 = vector.shape_cast %163 : vector<8xf32> to vector<8x1xf32>
    %165 = vector.broadcast %164 : vector<8x1xf32> to vector<8x8xf32>
    %166 = arith.subf %162, %165 : vector<8x8xf32>
    %167 = math.exp %166 : vector<8x8xf32>
    %cst_64 = arith.constant dense<0.000000e+00> : vector<8xf32>
    %168 = vector.multi_reduction <add>, %167, %cst_64 [1] : vector<8x8xf32> to vector<8xf32>
    %169 = vector.shape_cast %168 : vector<8xf32> to vector<8x1xf32>
    %170 = tpu.reciprocal %169 {approx = true} : vector<8x1xf32> -> vector<8x1xf32>
    %171 = vector.broadcast %170 : vector<8x1xf32> to vector<8x8xf32>
    %172 = arith.mulf %167, %171 : vector<8x8xf32>
    %173 = arith.truncf %172 : vector<8x8xf32> to vector<8x8xbf16>
    %cst_65 = arith.constant dense<0.000000e+00> : vector<8x32xf32>
    %174 = tpu.matmul %173, %159, %cst_65 {dimension_numbers = #tpu.dot_dimension_numbers<[1], [0], [0], [1], [0, 0, 1, 1], [], []>} : vector<8x8xbf16>, vector<8x32xbf16>, vector<8x32xf32> -> vector<8x32xf32>
    %175 = arith.truncf %174 : vector<8x32xf32> to vector<8x32xbf16>
    %176 = vector.extract_strided_slice %13 {offsets = [192, 0], sizes = [32, 32], strides = [1, 1]} : vector<256x32xbf16> to vector<32x32xbf16>
    %cst_66 = arith.constant dense<0.000000e+00> : vector<8x32xf32>
    %177 = tpu.matmul %175, %176, %cst_66 {dimension_numbers = #tpu.dot_dimension_numbers<[1], [0], [0], [1], [0, 0, 1, 1], [], []>} : vector<8x32xbf16>, vector<32x32xbf16>, vector<8x32xf32> -> vector<8x32xf32>
    %178 = arith.addf %156, %177 : vector<8x32xf32>
    %179 = vector.extract_strided_slice %6 {offsets = [0, 224], sizes = [8, 32], strides = [1, 1]} : vector<8x256xbf16> to vector<8x32xbf16>
    %180 = vector.extract_strided_slice %9 {offsets = [0, 224], sizes = [8, 32], strides = [1, 1]} : vector<8x256xbf16> to vector<8x32xbf16>
    %181 = vector.extract_strided_slice %12 {offsets = [0, 224], sizes = [8, 32], strides = [1, 1]} : vector<8x256xbf16> to vector<8x32xbf16>
    %cst_67 = arith.constant dense<0.000000e+00> : vector<8x8xf32>
    %182 = tpu.matmul %179, %180, %cst_67 {dimension_numbers = #tpu.dot_dimension_numbers<[1], [1], [0], [0], [0, 0, 1, 0], [], []>} : vector<8x32xbf16>, vector<8x32xbf16>, vector<8x8xf32> -> vector<8x8xf32>
    %cst_68 = arith.constant -1.000000e+09 : f32
    %183 = vector.broadcast %cst_68 : f32 to vector<8x8xf32>
    %184 = arith.select %23, %183, %182 : vector<8x8xi1>, vector<8x8xf32>
    %cst_69 = arith.constant dense<0xFF800000> : vector<8xf32>
    %185 = vector.multi_reduction <maximumf>, %184, %cst_69 [1] : vector<8x8xf32> to vector<8xf32>
    %186 = vector.shape_cast %185 : vector<8xf32> to vector<8x1xf32>
    %187 = vector.broadcast %186 : vector<8x1xf32> to vector<8x8xf32>
    %188 = arith.subf %184, %187 : vector<8x8xf32>
    %189 = math.exp %188 : vector<8x8xf32>
    %cst_70 = arith.constant dense<0.000000e+00> : vector<8xf32>
    %190 = vector.multi_reduction <add>, %189, %cst_70 [1] : vector<8x8xf32> to vector<8xf32>
    %191 = vector.shape_cast %190 : vector<8xf32> to vector<8x1xf32>
    %192 = tpu.reciprocal %191 {approx = true} : vector<8x1xf32> -> vector<8x1xf32>
    %193 = vector.broadcast %192 : vector<8x1xf32> to vector<8x8xf32>
    %194 = arith.mulf %189, %193 : vector<8x8xf32>
    %195 = arith.truncf %194 : vector<8x8xf32> to vector<8x8xbf16>
    %cst_71 = arith.constant dense<0.000000e+00> : vector<8x32xf32>
    %196 = tpu.matmul %195, %181, %cst_71 {dimension_numbers = #tpu.dot_dimension_numbers<[1], [0], [0], [1], [0, 0, 1, 1], [], []>} : vector<8x8xbf16>, vector<8x32xbf16>, vector<8x32xf32> -> vector<8x32xf32>
    %197 = arith.truncf %196 : vector<8x32xf32> to vector<8x32xbf16>
    %198 = vector.extract_strided_slice %13 {offsets = [224, 0], sizes = [32, 32], strides = [1, 1]} : vector<256x32xbf16> to vector<32x32xbf16>
    %cst_72 = arith.constant dense<0.000000e+00> : vector<8x32xf32>
    %199 = tpu.matmul %197, %198, %cst_72 {dimension_numbers = #tpu.dot_dimension_numbers<[1], [0], [0], [1], [0, 0, 1, 1], [], []>} : vector<8x32xbf16>, vector<32x32xbf16>, vector<8x32xf32> -> vector<8x32xf32>
    %200 = arith.addf %178, %199 : vector<8x32xf32>
    %201 = vector.broadcast %14 : vector<1x32xf32> to vector<8x32xf32>
    %202 = arith.addf %200, %201 : vector<8x32xf32>
    %c0_73 = arith.constant 0 : index
    %c0_74 = arith.constant 0 : index
    %c0_75 = arith.constant 0 : index
    %203 = vector.load %arg10[%c0_73, %c0_74, %c0_75] : memref<1x8x32xf32, #tpu.memory_space<vmem>>, vector<1x8x32xf32>
    %204 = vector.shape_cast %203 : vector<1x8x32xf32> to vector<8x32xf32>
    %205 = vector.shape_cast %202 : vector<8x32xf32> to vector<1x8x32xf32>
    tpu.vector_store %arg10[%c0_73, %c0_74, %c0_75], %205 {strides = array<i32>} : memref<1x8x32xf32, #tpu.memory_space<vmem>>, vector<1x8x32xf32>,
    return
  }
  func.func @transform_0(%arg0: i32) -> (i32, i32, i32) {
    %c0_i32 = arith.constant 0 : i32
    %c0_i32_0 = arith.constant 0 : i32
    %c0_i32_1 = arith.constant 0 : i32
    return %arg0, %c0_i32, %c0_i32_0 : i32, i32, i32
  }
  func.func @transform_1(%arg0: i32) -> (i32, i32, i32) {
    %c0_i32 = arith.constant 0 : i32
    %c0_i32_0 = arith.constant 0 : i32
    %c0_i32_1 = arith.constant 0 : i32
    return %arg0, %c0_i32, %c0_i32_0 : i32, i32, i32
  }
  func.func @transform_2(%arg0: i32) -> (i32, i32, i32) {
    %c0_i32 = arith.constant 0 : i32
    %c0_i32_0 = arith.constant 0 : i32
    %c0_i32_1 = arith.constant 0 : i32
    return %arg0, %c0_i32, %c0_i32_0 : i32, i32, i32
  }
  func.func @transform_3(%arg0: i32) -> (i32, i32, i32) {
    %c0_i32 = arith.constant 0 : i32
    %c0_i32_0 = arith.constant 0 : i32
    %c0_i32_1 = arith.constant 0 : i32
    return %arg0, %c0_i32, %c0_i32_0 : i32, i32, i32
  }
  func.func @transform_4(%arg0: i32) -> (i32, i32) {
    %c0_i32 = arith.constant 0 : i32
    %c0_i32_0 = arith.constant 0 : i32
    %c0_i32_1 = arith.constant 0 : i32
    return %c0_i32, %c0_i32_0 : i32, i32
  }
  func.func @transform_5(%arg0: i32) -> (i32, i32) {
    %c0_i32 = arith.constant 0 : i32
    %c0_i32_0 = arith.constant 0 : i32
    %c0_i32_1 = arith.constant 0 : i32
    return %c0_i32, %c0_i32_0 : i32, i32
  }
  func.func @transform_6(%arg0: i32) -> (i32, i32) {
    %c0_i32 = arith.constant 0 : i32
    %c0_i32_0 = arith.constant 0 : i32
    %c0_i32_1 = arith.constant 0 : i32
    return %c0_i32, %c0_i32_0 : i32, i32
  }
  func.func @transform_7(%arg0: i32) -> (i32, i32) {
    %c0_i32 = arith.constant 0 : i32
    %c0_i32_0 = arith.constant 0 : i32
    %c0_i32_1 = arith.constant 0 : i32
    return %c0_i32, %c0_i32_0 : i32, i32
  }
  func.func @transform_8(%arg0: i32) -> (i32, i32) {
    %c0_i32 = arith.constant 0 : i32
    %c0_i32_0 = arith.constant 0 : i32
    %c0_i32_1 = arith.constant 0 : i32
    return %c0_i32, %c0_i32_0 : i32, i32
  }
  func.func @transform_9(%arg0: i32) -> (i32, i32, i32) {
    %c0_i32 = arith.constant 0 : i32
    %c0_i32_0 = arith.constant 0 : i32
    %c0_i32_1 = arith.constant 0 : i32
    return %arg0, %c0_i32, %c0_i32_0 : i32, i32, i32
  }
}

</mosaic_0001>

<llo_original>
// kernel: tpu_custom_call.1
$region0: #{tpu_custom_call.1}
  #allocation0 [shape = 'u32[]', space=smem, size = 0x4, offset = 0x4, fixed_abs, tag = 'smem constant byte address 0x4 - core index']
  #allocation1 [shape = 'u32[144,128]{1,0:T(1,128)}', space=vmem, size = 0x12000, scoped, tag = 'internal scratch']
  %s0 = inlined_call_operand.vmem [shape: bf16[2,8,32], index: 0, kind: input, shape index: {}]
  %s1 = inlined_call_operand.vmem [shape: bf16[2,8,32], index: 1, kind: input, shape index: {}]
  %s2 = inlined_call_operand.vmem [shape: f32[2,1,8], index: 2, kind: input, shape index: {}]
  %s3 = inlined_call_operand.vmem [shape: f32[2,8,1], index: 3, kind: input, shape index: {}]
  %s4 = inlined_call_operand.vmem [shape: bf16[32,256], index: 4, kind: input, shape index: {}]
  %s5 = inlined_call_operand.vmem [shape: bf16[32,256], index: 5, kind: input, shape index: {}]
  %s6 = inlined_call_operand.vmem [shape: bf16[32,256], index: 6, kind: input, shape index: {}]
  %s7 = inlined_call_operand.vmem [shape: bf16[256,32], index: 7, kind: input, shape index: {}]
  %s8 = inlined_call_operand.vmem [shape: f32[1,32], index: 8, kind: input, shape index: {}]
  %s9 = inlined_call_operand.hbm [shape: f32[2,8,32], index: 9, kind: output, shape index: {}]
  %s10 = sld [smem:[#allocation0]]
  $region69: #{tpu_custom_call.1} parent=0
    _
  %s12 = ssub.s32 1, %s10
  %s13 = scalar_select 0, %s12, %s10
  $region1: #{tpu_custom_call.1} parent=0
    #allocation2 [shape = 'u8[8192]{0}', space=vmem, size = 0x2000, scoped, tag = 'output window, operand 0']
    #allocation3 [shape = 's32[2]{0}', space=sflag, size = 0x8, scoped, tag = 'scoped memory for tpu_custom_call.1']
    %14 = vsyncpa [#allocation3], 0
    %s15 = scalar_lea.sflag [#allocation3], 1
    %16 = vsyncpa %s15, 0
    loop: start=0, step=1, limit=4
    $region2: #{tpu_custom_call.1} parent=1 // loop_pre_header
      _
    $region3: #{tpu_custom_call.1} parent=1 // loop_header
      %s18 = sphi 0, %s22
      %p19 = scmp.ge.s32.totalorder %s18, 4
      %s28 = sphi 0, %s30
      %s31 = sphi 0, %s28
      %s32 = sphi 0, %s31
      %s48 = sphi 0, %s32
      %s54 = sphi 0, %s56
      %s57 = sphi 0, %s54
      %s58 = sphi 0, %s57
      %s74 = sphi 0, %s58
      %s80 = sphi 0, %s82
      %s83 = sphi 0, %s80
      %s84 = sphi 0, %s83
      %s100 = sphi 0, %s84
      %s106 = sphi 0, %s108
      %s109 = sphi 0, %s106
      %s110 = sphi 0, %s109
      %s126 = sphi 0, %s110
      %s130 = sphi 0, %s130
      %s132 = sphi 0, %s130
      %s133 = sphi 0, %s132
      %s147 = sphi 0, %s133
      %s151 = sphi 0, %s151
      %s153 = sphi 0, %s151
      %s154 = sphi 0, %s153
      %s168 = sphi 0, %s154
      %s172 = sphi 0, %s172
      %s174 = sphi 0, %s172
      %s175 = sphi 0, %s174
      %s189 = sphi 0, %s175
      %s193 = sphi 0, %s193
      %s195 = sphi 0, %s193
      %s196 = sphi 0, %s195
      %s210 = sphi 0, %s196
      %s214 = sphi 0, %s214
      %s216 = sphi 0, %s214
      %s217 = sphi 0, %s216
      %s231 = sphi 0, %s217
      %s237 = sphi 0, %s239
      %s240 = sphi 0, %s237
      %s241 = sphi 0, %s240
      %s257 = sphi 0, %s241
    $region4: #{tpu_custom_call.1} parent=1 // loop_header_branch
      %21 = sbr.rel (%p19) target = $region8
    $region5: #{tpu_custom_call.1} parent=1 // loop_body
      %s23 = ssub.s32 %s18, 1
      %s24 = ssub.s32 %s18, 2
      %s25 = sadd.s32 %s18, 1
      %s26 = ssub.s32 %s18, %s25
      %p27 = scmp.eq.s32.totalorder %s26, 0
      %s29 = sadd.s32 %s28, 1
      %s30 = scalar_select %p27, %s28, %s29
      %p33 = pneg %p27
      %p34 = scmp.eq.s32.totalorder %s18, 1
      %p35 = por %p33, %p34
      %p36 = scmp.ne.s32.totalorder %s28, %s31
      %p37 = scmp.eq.s32.totalorder %s18, 0
      %p38 = por %p36, %p37
      %p39 = scmp.ne.s32.totalorder %s28, %s31
      %p40 = scmp.eq.s32.totalorder %s23, 1
      %p41 = por %p39, %p40
      %p42 = scmp.ne.s32.totalorder %s31, %s32
      %p43 = scmp.eq.s32.totalorder %s23, 0
      %p44 = por %p42, %p43
      %p45 = scmp.ne.s32.totalorder %s31, %s32
      %p46 = scmp.eq.s32.totalorder %s24, 1
      %p47 = por %p45, %p46
      %p49 = scmp.ne.s32.totalorder %s32, %s48
      %p50 = scmp.eq.s32.totalorder %s24, 0
      %p51 = por %p49, %p50
      %s52 = ssub.s32 %s18, %s25
      %p53 = scmp.eq.s32.totalorder %s52, 0
      %s55 = sadd.s32 %s54, 1
      %s56 = scalar_select %p53, %s54, %s55
      %p59 = pneg %p53
      %p60 = scmp.eq.s32.totalorder %s18, 1
      %p61 = por %p59, %p60
      %p62 = scmp.ne.s32.totalorder %s54, %s57
      %p63 = scmp.eq.s32.totalorder %s18, 0
      %p64 = por %p62, %p63
      %p65 = scmp.ne.s32.totalorder %s54, %s57
      %p66 = scmp.eq.s32.totalorder %s23, 1
      %p67 = por %p65, %p66
      %p68 = scmp.ne.s32.totalorder %s57, %s58
      %p69 = scmp.eq.s32.totalorder %s23, 0
      %p70 = por %p68, %p69
      %p71 = scmp.ne.s32.totalorder %s57, %s58
      %p72 = scmp.eq.s32.totalorder %s24, 1
      %p73 = por %p71, %p72
      %p75 = scmp.ne.s32.totalorder %s58, %s74
      %p76 = scmp.eq.s32.totalorder %s24, 0
      %p77 = por %p75, %p76
      %s78 = ssub.s32 %s18, %s25
      %p79 = scmp.eq.s32.totalorder %s78, 0
      %s81 = sadd.s32 %s80, 1
      %s82 = scalar_select %p79, %s80, %s81
      %p85 = pneg %p79
      %p86 = scmp.eq.s32.totalorder %s18, 1
      %p87 = por %p85, %p86
      %p88 = scmp.ne.s32.totalorder %s80, %s83
      %p89 = scmp.eq.s32.totalorder %s18, 0
      %p90 = por %p88, %p89
      %p91 = scmp.ne.s32.totalorder %s80, %s83
      %p92 = scmp.eq.s32.totalorder %s23, 1
      %p93 = por %p91, %p92
      %p94 = scmp.ne.s32.totalorder %s83, %s84
      %p95 = scmp.eq.s32.totalorder %s23, 0
      %p96 = por %p94, %p95
      %p97 = scmp.ne.s32.totalorder %s83, %s84
      %p98 = scmp.eq.s32.totalorder %s24, 1
      %p99 = por %p97, %p98
      %p101 = scmp.ne.s32.totalorder %s84, %s100
      %p102 = scmp.eq.s32.totalorder %s24, 0
      %p103 = por %p101, %p102
      %s104 = ssub.s32 %s18, %s25
      %p105 = scmp.eq.s32.totalorder %s104, 0
      %s107 = sadd.s32 %s106, 1
      %s108 = scalar_select %p105, %s106, %s107
      %p111 = pneg %p105
      %p112 = scmp.eq.s32.totalorder %s18, 1
      %p113 = por %p111, %p112
      %p114 = scmp.ne.s32.totalorder %s106, %s109
      %p115 = scmp.eq.s32.totalorder %s18, 0
      %p116 = por %p114, %p115
      %p117 = scmp.ne.s32.totalorder %s106, %s109
      %p118 = scmp.eq.s32.totalorder %s23, 1
      %p119 = por %p117, %p118
      %p120 = scmp.ne.s32.totalorder %s109, %s110
      %p121 = scmp.eq.s32.totalorder %s23, 0
      %p122 = por %p120, %p121
      %p123 = scmp.ne.s32.totalorder %s109, %s110
      %p124 = scmp.eq.s32.totalorder %s24, 1
      %p125 = por %p123, %p124
      %p127 = scmp.ne.s32.totalorder %s110, %s126
      %p128 = scmp.eq.s32.totalorder %s24, 0
      %p129 = por %p127, %p128
      %s131 = sadd.s32 %s130, 1
      %p134 = scmp.eq.s32.totalorder %s18, 1
      %p135 = scmp.ne.s32.totalorder %s130, %s132
      %p136 = scmp.eq.s32.totalorder %s18, 0
      %p137 = por %p135, %p136
      %p138 = scmp.ne.s32.totalorder %s130, %s132
      %p139 = scmp.eq.s32.totalorder %s23, 1
      %p140 = por %p138, %p139
      %p141 = scmp.ne.s32.totalorder %s132, %s133
      %p142 = scmp.eq.s32.totalorder %s23, 0
      %p143 = por %p141, %p142
      %p144 = scmp.ne.s32.totalorder %s132, %s133
      %p145 = scmp.eq.s32.totalorder %s24, 1
      %p146 = por %p144, %p145
      %p148 = scmp.ne.s32.totalorder %s133, %s147
      %p149 = scmp.eq.s32.totalorder %s24, 0
      %p150 = por %p148, %p149
      %s152 = sadd.s32 %s151, 1
      %p155 = scmp.eq.s32.totalorder %s18, 1
      %p156 = scmp.ne.s32.totalorder %s151, %s153
      %p157 = scmp.eq.s32.totalorder %s18, 0
      %p158 = por %p156, %p157
      %p159 = scmp.ne.s32.totalorder %s151, %s153
      %p160 = scmp.eq.s32.totalorder %s23, 1
      %p161 = por %p159, %p160
      %p162 = scmp.ne.s32.totalorder %s153, %s154
      %p163 = scmp.eq.s32.totalorder %s23, 0
      %p164 = por %p162, %p163
      %p165 = scmp.ne.s32.totalorder %s153, %s154
      %p166 = scmp.eq.s32.totalorder %s24, 1
      %p167 = por %p165, %p166
      %p169 = scmp.ne.s32.totalorder %s154, %s168
      %p170 = scmp.eq.s32.totalorder %s24, 0
      %p171 = por %p169, %p170
      %s173 = sadd.s32 %s172, 1
      %p176 = scmp.eq.s32.totalorder %s18, 1
      %p177 = scmp.ne.s32.totalorder %s172, %s174
      %p178 = scmp.eq.s32.totalorder %s18, 0
      %p179 = por %p177, %p178
      %p180 = scmp.ne.s32.totalorder %s172, %s174
      %p181 = scmp.eq.s32.totalorder %s23, 1
      %p182 = por %p180, %p181
      %p183 = scmp.ne.s32.totalorder %s174, %s175
      %p184 = scmp.eq.s32.totalorder %s23, 0
      %p185 = por %p183, %p184
      %p186 = scmp.ne.s32.totalorder %s174, %s175
      %p187 = scmp.eq.s32.totalorder %s24, 1
      %p188 = por %p186, %p187
      %p190 = scmp.ne.s32.totalorder %s175, %s189
      %p191 = scmp.eq.s32.totalorder %s24, 0
      %p192 = por %p190, %p191
      %s194 = sadd.s32 %s193, 1
      %p197 = scmp.eq.s32.totalorder %s18, 1
      %p198 = scmp.ne.s32.totalorder %s193, %s195
      %p199 = scmp.eq.s32.totalorder %s18, 0
      %p200 = por %p198, %p199
      %p201 = scmp.ne.s32.totalorder %s193, %s195
      %p202 = scmp.eq.s32.totalorder %s23, 1
      %p203 = por %p201, %p202
      %p204 = scmp.ne.s32.totalorder %s195, %s196
      %p205 = scmp.eq.s32.totalorder %s23, 0
      %p206 = por %p204, %p205
      %p207 = scmp.ne.s32.totalorder %s195, %s196
      %p208 = scmp.eq.s32.totalorder %s24, 1
      %p209 = por %p207, %p208
      %p211 = scmp.ne.s32.totalorder %s196, %s210
      %p212 = scmp.eq.s32.totalorder %s24, 0
      %p213 = por %p211, %p212
      %s215 = sadd.s32 %s214, 1
      %p218 = scmp.eq.s32.totalorder %s18, 1
      %p219 = scmp.ne.s32.totalorder %s214, %s216
      %p220 = scmp.eq.s32.totalorder %s18, 0
      %p221 = por %p219, %p220
      %p222 = scmp.ne.s32.totalorder %s214, %s216
      %p223 = scmp.eq.s32.totalorder %s23, 1
      %p224 = por %p222, %p223
      %p225 = scmp.ne.s32.totalorder %s216, %s217
      %p226 = scmp.eq.s32.totalorder %s23, 0
      %p227 = por %p225, %p226
      %p228 = scmp.ne.s32.totalorder %s216, %s217
      %p229 = scmp.eq.s32.totalorder %s24, 1
      %p230 = por %p228, %p229
      %p232 = scmp.ne.s32.totalorder %s217, %s231
      %p233 = scmp.eq.s32.totalorder %s24, 0
      %p234 = por %p232, %p233
      %s235 = ssub.s32 %s18, %s25
      %p236 = scmp.eq.s32.totalorder %s235, 0
      %s238 = sadd.s32 %s237, 1
      %s239 = scalar_select %p236, %s237, %s238
      %p242 = pneg %p236
      %p243 = scmp.eq.s32.totalorder %s18, 1
      %p244 = por %p242, %p243
      %p245 = scmp.ne.s32.totalorder %s237, %s240
      %p246 = scmp.eq.s32.totalorder %s18, 0
      %p247 = por %p245, %p246
      %p248 = scmp.ne.s32.totalorder %s237, %s240
      %p249 = scmp.eq.s32.totalorder %s23, 1
      %p250 = por %p248, %p249
      %p251 = scmp.ne.s32.totalorder %s240, %s241
      %p252 = scmp.eq.s32.totalorder %s23, 0
      %p253 = por %p251, %p252
      %p254 = scmp.ne.s32.totalorder %s240, %s241
      %p255 = scmp.eq.s32.totalorder %s24, 1
      %p256 = por %p254, %p255
      %p258 = scmp.ne.s32.totalorder %s241, %s257
      %p259 = scmp.eq.s32.totalorder %s24, 0
      %p260 = por %p258, %p259
      %p261 = scmp.le.s32.totalorder 1, %s18
      %p262 = scmp.lt.s32.totalorder %s18, 3
      %p263 = pnand %p261, %p262
      %p264 = pneg %p263
      // Predicated region
      $region9: #{tpu_custom_call.1} parent=5 // pred_check
        _
      $region10: #{tpu_custom_call.1} parent=5 // pred_check_branch
        %266 = sbr.rel (%p263) target = $region12
      $region11: #{tpu_custom_call.1} parent=5 // pred_region
        %s267 = ssub.s32 %s18, 1
        // Predicated region
        $region13: #{tpu_custom_call.1} parent=11 // pred_check
          %p268 = pneg %p143
        $region14: #{tpu_custom_call.1} parent=11 // pred_check_branch
          %270 = sbr.rel (%p268) target = $region16
        $region15: #{tpu_custom_call.1} parent=11 // pred_region
          _
        $region16: #{tpu_custom_call.1} parent=11 // pred_fallthru
          _
        // Predicated region
        $region17: #{tpu_custom_call.1} parent=11 // pred_check
          %p271 = pneg %p164
        $region18: #{tpu_custom_call.1} parent=11 // pred_check_branch
          %273 = sbr.rel (%p271) target = $region20
        $region19: #{tpu_custom_call.1} parent=11 // pred_region
          _
        $region20: #{tpu_custom_call.1} parent=11 // pred_fallthru
          _
        // Predicated region
        $region21: #{tpu_custom_call.1} parent=11 // pred_check
          %p274 = pneg %p185
        $region22: #{tpu_custom_call.1} parent=11 // pred_check_branch
          %276 = sbr.rel (%p274) target = $region24
        $region23: #{tpu_custom_call.1} parent=11 // pred_region
          _
        $region24: #{tpu_custom_call.1} parent=11 // pred_fallthru
          _
        // Predicated region
        $region25: #{tpu_custom_call.1} parent=11 // pred_check
          %p277 = pneg %p206
        $region26: #{tpu_custom_call.1} parent=11 // pred_check_branch
          %279 = sbr.rel (%p277) target = $region28
        $region27: #{tpu_custom_call.1} parent=11 // pred_region
          _
        $region28: #{tpu_custom_call.1} parent=11 // pred_fallthru
          _
        // Predicated region
        $region29: #{tpu_custom_call.1} parent=11 // pred_check
          %p280 = pneg %p227
        $region30: #{tpu_custom_call.1} parent=11 // pred_check_branch
          %282 = sbr.rel (%p280) target = $region32
        $region31: #{tpu_custom_call.1} parent=11 // pred_region
          _
        $region32: #{tpu_custom_call.1} parent=11 // pred_fallthru
          _
      $region12: #{tpu_custom_call.1} parent=5 // pred_fallthru
        _
      %p283 = scmp.lt.s32.totalorder %s18, 2
      // Predicated region
      $region33: #{tpu_custom_call.1} parent=5 // pred_check
        %p284 = pneg %p283
      $region34: #{tpu_custom_call.1} parent=5 // pred_check_branch
        %286 = sbr.rel (%p284) target = $region36
      $region35: #{tpu_custom_call.1} parent=5 // pred_region
        // Predicated region
        $region37: #{tpu_custom_call.1} parent=35 // pred_check
          %p287 = pneg %p38
        $region38: #{tpu_custom_call.1} parent=35 // pred_check_branch
          %289 = sbr.rel (%p287) target = $region40
        $region39: #{tpu_custom_call.1} parent=35 // pred_region
          %p290 = scmp.lt.s32.totalorder %s18, 1
          %s291 = scalar_select %p290, %s18, 1
          %s292 = smul.addr %s291, 4
          %s293 = scalar_lea.vmem %s0, %s292
        $region40: #{tpu_custom_call.1} parent=35 // pred_fallthru
          _
        // Predicated region
        $region41: #{tpu_custom_call.1} parent=35 // pred_check
          %p294 = pneg %p64
        $region42: #{tpu_custom_call.1} parent=35 // pred_check_branch
          %296 = sbr.rel (%p294) target = $region44
        $region43: #{tpu_custom_call.1} parent=35 // pred_region
          %p297 = scmp.lt.s32.totalorder %s18, 1
          %s298 = scalar_select %p297, %s18, 1
          %s299 = smul.addr %s298, 4
          %s300 = scalar_lea.vmem %s1, %s299
        $region44: #{tpu_custom_call.1} parent=35 // pred_fallthru
          _
        // Predicated region
        $region45: #{tpu_custom_call.1} parent=35 // pred_check
          %p301 = pneg %p90
        $region46: #{tpu_custom_call.1} parent=35 // pred_check_branch
          %303 = sbr.rel (%p301) target = $region48
        $region47: #{tpu_custom_call.1} parent=35 // pred_region
          %p304 = scmp.lt.s32.totalorder %s18, 1
          %s305 = scalar_select %p304, %s18, 1
          %s306 = scalar_lea.vmem %s2, %s305
        $region48: #{tpu_custom_call.1} parent=35 // pred_fallthru
          _
        // Predicated region
        $region49: #{tpu_custom_call.1} parent=35 // pred_check
          %p307 = pneg %p116
        $region50: #{tpu_custom_call.1} parent=35 // pred_check_branch
          %309 = sbr.rel (%p307) target = $region52
        $region51: #{tpu_custom_call.1} parent=35 // pred_region
          %p310 = scmp.lt.s32.totalorder %s18, 1
          %s311 = scalar_select %p310, %s18, 1
          %s312 = smul.addr %s311, 8
          %s313 = scalar_lea.vmem %s3, %s312
        $region52: #{tpu_custom_call.1} parent=35 // pred_fallthru
          _
      $region36: #{tpu_custom_call.1} parent=5 // pred_fallthru
        _
      %p314 = scmp.le.s32.totalorder 1, %s18
      %p315 = scmp.lt.s32.totalorder %s18, 3
      %p316 = pnand %p314, %p315
      %p317 = pneg %p316
      // Predicated region
      $region53: #{tpu_custom_call.1} parent=5 // pred_check
        _
      $region54: #{tpu_custom_call.1} parent=5 // pred_check_branch
        %319 = sbr.rel (%p316) target = $region56
      $region55: #{tpu_custom_call.1} parent=5 // pred_region
        %s320 = ssub.s32 %s18, 1
        %p321 = scmp.lt.s32.totalorder %s23, 1
        %s322 = scalar_select %p321, %s23, 1
        %s323 = smul.addr %s322, 4
        %s324 = scalar_lea.vmem %s0, %s323
        %p325 = pneg %p44
        %p326 = pneg %p41
        %p327 = scmp.lt.s32.totalorder %s23, 1
        %s328 = scalar_select %p327, %s23, 1
        %s329 = smul.addr %s328, 4
        %s330 = scalar_lea.vmem %s1, %s329
        %p331 = pneg %p70
        %p332 = pneg %p67
        %p333 = scmp.lt.s32.totalorder %s23, 1
        %s334 = scalar_select %p333, %s23, 1
        %s335 = scalar_lea.vmem %s2, %s334
        %p336 = pneg %p96
        %p337 = pneg %p93
        %p338 = scmp.lt.s32.totalorder %s23, 1
        %s339 = scalar_select %p338, %s23, 1
        %s340 = smul.addr %s339, 8
        %s341 = scalar_lea.vmem %s3, %s340
        %p342 = pneg %p122
        %p343 = pneg %p119
        %p344 = pneg %p143
        %p345 = pneg %p140
        %p346 = pneg %p164
        %p347 = pneg %p161
        %p348 = pneg %p185
        %p349 = pneg %p182
        %p350 = pneg %p206
        %p351 = pneg %p203
        %p352 = pneg %p227
        %p353 = pneg %p224
        %p354 = pneg %p253
        %p355 = pneg %p250
        %s356 = sand.u32 %s240, 1
        %s357 = scalar_lea.sflag [#allocation3], %s356
        %s358 = sand.u32 %s240, 1
        %s359 = smul.addr %s358, 8
        %s360 = scalar_lea.vmem [#allocation2], %s359
        %p361 = scmp.lt.s32.totalorder %s23, 1
        %s362 = scalar_select %p361, %s23, 1
        %s363 = smul.addr %s362, 4
        %s364 = scalar_lea.vmem %s0, %s363
        %p365 = scmp.lt.s32.totalorder %s23, 1
        %s366 = scalar_select %p365, %s23, 1
        %s367 = smul.addr %s366, 4
        %s368 = scalar_lea.vmem %s1, %s367
        %p369 = scmp.lt.s32.totalorder %s23, 1
        %s370 = scalar_select %p369, %s23, 1
        %s371 = scalar_lea.vmem %s2, %s370
        %p372 = scmp.lt.s32.totalorder %s23, 1
        %s373 = scalar_select %p372, %s23, 1
        %s374 = smul.addr %s373, 8
        %s375 = scalar_lea.vmem %s3, %s374
        %v377 = vld [vmem:[%s364] sm:$0xf]
        %v378 = vld [vmem:[%s368] sm:$0xf]
        %v379 = vld [vmem:[%s4] sm:$0xff]
        %v380 = vld [vmem:[%s4 + $0x8] sm:$0xff]
        %v381 = vld [vmem:[%s4 + $0x10] sm:$0xff]
        %v382 = vld [vmem:[%s4 + $0x18] sm:$0xff]
        %v387 = vunpack.c.l.b16 %v379
        %v388 = vunpack.c.h.b16 %v379
        %v389 = vunpack.c.l.b16 %v380
        %v390 = vunpack.c.h.b16 %v380
        %v391 = vunpack.c.l.b16 %v381
        %v392 = vunpack.c.h.b16 %v381
        %v393 = vunpack.c.l.b16 %v382
        %v394 = vunpack.c.h.b16 %v382
        %v395 = vpack.c.b16 %v389, %v387
        %v396 = vpack.c.b16 %v390, %v388
        %v397 = vpack.c.b16 %v393, %v391
        %v398 = vpack.c.b16 %v394, %v392
        %vm403 = vcmask 261120
        %v405 = vsel %vm403, %v377, 0
        %407 = vmatprep.subr.bf16.mxu0 %v396
        %408 = vmatpush1.bf16.msra.mxu0 %v395
        %409 = vmatprep.subr.bf16.mxu0 %v398
        %410 = vmatpush1.bf16.msra.mxu0 %v397
        %411 = vmatprep.subr.bf16.mxu0 0
        %412 = vmatpush1.bf16.msra.mxu0 0
        %413 = vmatprep.subr.bf16.mxu0 0
        %414 = vmatpush1.bf16.msra.mxu0 0
        %415 = vmatprep.subr.bf16.mxu0 0
        %416 = vmatpush1.bf16.msra.mxu0 0
        %417 = vmatprep.subr.bf16.mxu0 0
        %418 = vmatpush1.bf16.msra.mxu0 0
        %419 = vmatprep.subr.bf16.mxu0 0
        %420 = vmatpush1.bf16.msra.mxu0 0
        %421 = vmatprep.subr.bf16.mxu0 0
        %422 = vmatpush1.bf16.msra.mxu0 0
        %423 = vmatprep.subr.bf16.mxu0 0
        %424 = vmatpush1.bf16.msra.mxu0 0
        %425 = vmatprep.subr.bf16.mxu0 0
        %426 = vmatpush1.bf16.msra.mxu0 0
        %427 = vmatprep.subr.bf16.mxu0 0
        %428 = vmatpush1.bf16.msra.mxu0 0
        %429 = vmatprep.subr.bf16.mxu0 0
        %430 = vmatpush1.bf16.msra.mxu0 0
        %431 = vmatprep.subr.bf16.mxu0 0
        %432 = vmatpush1.bf16.msra.mxu0 0
        %433 = vmatprep.subr.bf16.mxu0 0
        %434 = vmatpush1.bf16.msra.mxu0 0
        %435 = vmatprep.subr.bf16.mxu0 0
        %436 = vmatpush1.bf16.msra.mxu0 0
        %437 = vmatprep.subr.bf16.mxu0 0
        %438 = vmatpush1.bf16.msra.mxu0 0
        %439 = vmatprep.mubr.bf16.mxu0 0
        %440 = vmatmul.mubr.bf16.gmra.mrb[0].mxu0 %v405
        %v441 = vpop.f32.mrb[0].mxu0
        %v442 = vadd.f32 0.0, %v441
        %v443 = vpop.f32.mrb[0].mxu0
        %v444 = vadd.f32 0.0, %v443
        %v445 = vpop.f32.mrb[0].mxu0
        %v446 = vpop.f32.mrb[0].mxu0
        %447 = vdwg.mxu0
        %v448 = vpack.c.bf16 %v442, %v442
        %v449 = vpack.c.bf16 %v444, %v444
        %v450 = vld [vmem:[%s5] sm:$0xff]
        %v451 = vld [vmem:[%s5 + $0x8] sm:$0xff]
        %v452 = vld [vmem:[%s5 + $0x10] sm:$0xff]
        %v453 = vld [vmem:[%s5 + $0x18] sm:$0xff]
        %v458 = vunpack.c.l.b16 %v450
        %v459 = vunpack.c.h.b16 %v450
        %v460 = vunpack.c.l.b16 %v451
        %v461 = vunpack.c.h.b16 %v451
        %v462 = vunpack.c.l.b16 %v452
        %v463 = vunpack.c.h.b16 %v452
        %v464 = vunpack.c.l.b16 %v453
        %v465 = vunpack.c.h.b16 %v453
        %v466 = vpack.c.b16 %v460, %v458
        %v467 = vpack.c.b16 %v461, %v459
        %v468 = vpack.c.b16 %v464, %v462
        %v469 = vpack.c.b16 %v465, %v463
        %v475 = vsel %vm403, %v378, 0
        %477 = vmatprep.subr.bf16.mxu0 %v467
        %478 = vmatpush1.bf16.msra.mxu0 %v466
        %479 = vmatprep.subr.bf16.mxu0 %v469
        %480 = vmatpush1.bf16.msra.mxu0 %v468
        %481 = vmatprep.subr.bf16.mxu0 0
        %482 = vmatpush1.bf16.msra.mxu0 0
        %483 = vmatprep.subr.bf16.mxu0 0
        %484 = vmatpush1.bf16.msra.mxu0 0
        %485 = vmatprep.subr.bf16.mxu0 0
        %486 = vmatpush1.bf16.msra.mxu0 0
        %487 = vmatprep.subr.bf16.mxu0 0
        %488 = vmatpush1.bf16.msra.mxu0 0
        %489 = vmatprep.subr.bf16.mxu0 0
        %490 = vmatpush1.bf16.msra.mxu0 0
        %491 = vmatprep.subr.bf16.mxu0 0
        %492 = vmatpush1.bf16.msra.mxu0 0
        %493 = vmatprep.subr.bf16.mxu0 0
        %494 = vmatpush1.bf16.msra.mxu0 0
        %495 = vmatprep.subr.bf16.mxu0 0
        %496 = vmatpush1.bf16.msra.mxu0 0
        %497 = vmatprep.subr.bf16.mxu0 0
        %498 = vmatpush1.bf16.msra.mxu0 0
        %499 = vmatprep.subr.bf16.mxu0 0
        %500 = vmatpush1.bf16.msra.mxu0 0
        %501 = vmatprep.subr.bf16.mxu0 0
        %502 = vmatpush1.bf16.msra.mxu0 0
        %503 = vmatprep.subr.bf16.mxu0 0
        %504 = vmatpush1.bf16.msra.mxu0 0
        %505 = vmatprep.subr.bf16.mxu0 0
        %506 = vmatpush1.bf16.msra.mxu0 0
        %507 = vmatprep.subr.bf16.mxu0 0
        %508 = vmatpush1.bf16.msra.mxu0 0
        %509 = vmatprep.mubr.bf16.mxu0 0
        %510 = vmatmul.mubr.bf16.gmra.mrb[0].mxu0 %v475
        %v511 = vpop.f32.mrb[0].mxu0
        %v512 = vadd.f32 0.0, %v511
        %v513 = vpop.f32.mrb[0].mxu0
        %v514 = vadd.f32 0.0, %v513
        %v515 = vpop.f32.mrb[0].mxu0
        %v516 = vpop.f32.mrb[0].mxu0
        %517 = vdwg.mxu0
        %v518 = vpack.c.bf16 %v512, %v512
        %v519 = vpack.c.bf16 %v514, %v514
        %v520 = vld [vmem:[%s6] sm:$0xff]
        %v521 = vld [vmem:[%s6 + $0x8] sm:$0xff]
        %v522 = vld [vmem:[%s6 + $0x10] sm:$0xff]
        %v523 = vld [vmem:[%s6 + $0x18] sm:$0xff]
        %v528 = vunpack.c.l.b16 %v520
        %v529 = vunpack.c.h.b16 %v520
        %v530 = vunpack.c.l.b16 %v521
        %v531 = vunpack.c.h.b16 %v521
        %v532 = vunpack.c.l.b16 %v522
        %v533 = vunpack.c.h.b16 %v522
        %v534 = vunpack.c.l.b16 %v523
        %v535 = vunpack.c.h.b16 %v523
        %v536 = vpack.c.b16 %v530, %v528
        %v537 = vpack.c.b16 %v531, %v529
        %v538 = vpack.c.b16 %v534, %v532
        %v539 = vpack.c.b16 %v535, %v533
        %544 = vmatprep.subr.bf16.mxu0 %v537
        %545 = vmatpush1.bf16.msra.mxu0 %v536
        %546 = vmatprep.subr.bf16.mxu0 %v539
        %547 = vmatpush1.bf16.msra.mxu0 %v538
        %548 = vmatprep.subr.bf16.mxu0 0
        %549 = vmatpush1.bf16.msra.mxu0 0
        %550 = vmatprep.subr.bf16.mxu0 0
        %551 = vmatpush1.bf16.msra.mxu0 0
        %552 = vmatprep.subr.bf16.mxu0 0
        %553 = vmatpush1.bf16.msra.mxu0 0
        %554 = vmatprep.subr.bf16.mxu0 0
        %555 = vmatpush1.bf16.msra.mxu0 0
        %556 = vmatprep.subr.bf16.mxu0 0
        %557 = vmatpush1.bf16.msra.mxu0 0
        %558 = vmatprep.subr.bf16.mxu0 0
        %559 = vmatpush1.bf16.msra.mxu0 0
        %560 = vmatprep.subr.bf16.mxu0 0
        %561 = vmatpush1.bf16.msra.mxu0 0
        %562 = vmatprep.subr.bf16.mxu0 0
        %563 = vmatpush1.bf16.msra.mxu0 0
        %564 = vmatprep.subr.bf16.mxu0 0
        %565 = vmatpush1.bf16.msra.mxu0 0
        %566 = vmatprep.subr.bf16.mxu0 0
        %567 = vmatpush1.bf16.msra.mxu0 0
        %568 = vmatprep.subr.bf16.mxu0 0
        %569 = vmatpush1.bf16.msra.mxu0 0
        %570 = vmatprep.subr.bf16.mxu0 0
        %571 = vmatpush1.bf16.msra.mxu0 0
        %572 = vmatprep.subr.bf16.mxu0 0
        %573 = vmatpush1.bf16.msra.mxu0 0
        %574 = vmatprep.subr.bf16.mxu0 0
        %575 = vmatpush1.bf16.msra.mxu0 0
        %576 = vmatprep.mubr.bf16.mxu0 0
        %577 = vmatmul.mubr.bf16.gmra.mrb[0].mxu0 %v475
        %v578 = vpop.f32.mrb[0].mxu0
        %v579 = vadd.f32 0.0, %v578
        %v580 = vpop.f32.mrb[0].mxu0
        %v581 = vadd.f32 0.0, %v580
        %v582 = vpop.f32.mrb[0].mxu0
        %v583 = vpop.f32.mrb[0].mxu0
        %584 = vdwg.mxu0
        %v585 = vpack.c.bf16 %v579, %v579
        %v586 = vpack.c.bf16 %v581, %v581
        %v587 = vld [vmem:[%s7] sm:$0xf]
        %v588 = vld [vmem:[%s7 + $0x4] sm:$0xf]
        %v589 = vld [vmem:[%s7 + $0x8] sm:$0xf]
        %v590 = vld [vmem:[%s7 + $0xc] sm:$0xf]
        %v591 = vld [vmem:[%s7 + $0x10] sm:$0xf]
        %v592 = vld [vmem:[%s7 + $0x14] sm:$0xf]
        %v593 = vld [vmem:[%s7 + $0x18] sm:$0xf]
        %v594 = vld [vmem:[%s7 + $0x1c] sm:$0xf]
        %v595 = vld [vmem:[%s7 + $0x20] sm:$0xf]
        %v596 = vld [vmem:[%s7 + $0x24] sm:$0xf]
        %v597 = vld [vmem:[%s7 + $0x28] sm:$0xf]
        %v598 = vld [vmem:[%s7 + $0x2c] sm:$0xf]
        %v599 = vld [vmem:[%s7 + $0x30] sm:$0xf]
        %v600 = vld [vmem:[%s7 + $0x34] sm:$0xf]
        %v601 = vld [vmem:[%s7 + $0x38] sm:$0xf]
        %v602 = vld [vmem:[%s7 + $0x3c] sm:$0xf]
        %v603 = vld [vmem:[%s7 + $0x40] sm:$0xf]
        %v604 = vld [vmem:[%s7 + $0x44] sm:$0xf]
        %v605 = vld [vmem:[%s7 + $0x48] sm:$0xf]
        %v606 = vld [vmem:[%s7 + $0x4c] sm:$0xf]
        %v607 = vld [vmem:[%s7 + $0x50] sm:$0xf]
        %v608 = vld [vmem:[%s7 + $0x54] sm:$0xf]
        %v609 = vld [vmem:[%s7 + $0x58] sm:$0xf]
        %v610 = vld [vmem:[%s7 + $0x5c] sm:$0xf]
        %v611 = vld [vmem:[%s7 + $0x60] sm:$0xf]
        %v612 = vld [vmem:[%s7 + $0x64] sm:$0xf]
        %v613 = vld [vmem:[%s7 + $0x68] sm:$0xf]
        %v614 = vld [vmem:[%s7 + $0x6c] sm:$0xf]
        %v615 = vld [vmem:[%s7 + $0x70] sm:$0xf]
        %v616 = vld [vmem:[%s7 + $0x74] sm:$0xf]
        %v617 = vld [vmem:[%s7 + $0x78] sm:$0xf]
        %v618 = vld [vmem:[%s7 + $0x7c] sm:$0xf]
        %v619 = vld [vmem:[%s8] sm:$0x1]
        %v620 = vld [vmem:[%s371] sm:$0x1]
        %v621 = vld [vmem:[%s375] sm:$0xff]
        %623 = vset.pattern.permute.xlu0 0
        %624 = vperm.xlu0 %623, %v621
        %v625 = vpop.permute.xlu0 %624
        %v628 = vlaneseq
        %v629 = vshrl.u32 %v628, 7
        %v630 = vsub.s32 0, %v629
        %v631 = vrot.slane %v620, %v630
        %v633 = vmul.f32 %v625, %v631
        %vm634 = vcmp.eq.f32.partialorder %v633, 0.0
        %v636 = vsel %vm403, %v448, 0
        %v639 = vsel %vm403, %v518, 0
        %641 = vmatprep.subr.bf16.mxu0 0
        %642 = vmatpush1.bf16.xpose.msra.mxu0 %v639
        %643 = vmatprep.subr.bf16.mxu0 0
        %644 = vmatpush1.bf16.xpose.msra.mxu0 0
        %645 = vmatprep.subr.bf16.mxu0 0
        %646 = vmatpush1.bf16.xpose.msra.mxu0 0
        %647 = vmatprep.subr.bf16.mxu0 0
        %648 = vmatpush1.bf16.xpose.msra.mxu0 0
        %649 = vmatprep.subr.bf16.mxu0 0
        %650 = vmatpush1.bf16.xpose.msra.mxu0 0
        %651 = vmatprep.subr.bf16.mxu0 0
        %652 = vmatpush1.bf16.xpose.msra.mxu0 0
        %653 = vmatprep.subr.bf16.mxu0 0
        %654 = vmatpush1.bf16.xpose.msra.mxu0 0
        %655 = vmatprep.subr.bf16.mxu0 0
        %656 = vmatpush1.bf16.xpose.msra.mxu0 0
        %657 = vmatprep.subr.bf16.mxu0 0
        %658 = vmatpush1.bf16.xpose.msra.mxu0 0
        %659 = vmatprep.subr.bf16.mxu0 0
        %660 = vmatpush1.bf16.xpose.msra.mxu0 0
        %661 = vmatprep.subr.bf16.mxu0 0
        %662 = vmatpush1.bf16.xpose.msra.mxu0 0
        %663 = vmatprep.subr.bf16.mxu0 0
        %664 = vmatpush1.bf16.xpose.msra.mxu0 0
        %665 = vmatprep.subr.bf16.mxu0 0
        %666 = vmatpush1.bf16.xpose.msra.mxu0 0
        %667 = vmatprep.subr.bf16.mxu0 0
        %668 = vmatpush1.bf16.xpose.msra.mxu0 0
        %669 = vmatprep.subr.bf16.mxu0 0
        %670 = vmatpush1.bf16.xpose.msra.mxu0 0
        %671 = vmatprep.subr.bf16.mxu0 0
        %672 = vmatpush1.bf16.xpose.msra.mxu0 0
        %673 = vmatprep.mubr.bf16.mxu0 0
        %674 = vmatmul.mubr.bf16.gmra.mrb[0].mxu0 %v636
        %v675 = vpop.f32.mrb[0].mxu0
        %v676 = vadd.f32 0.0, %v675
        %v677 = vpop.f32.mrb[0].mxu0
        %v678 = vpop.f32.mrb[0].mxu0
        %v679 = vpop.f32.mrb[0].mxu0
        %680 = vdwg.mxu0
        %v681 = vsel %vm634, -1e+09, %v676
        %vm682 = vcmask 64512
        %v683 = vsel %vm682, %v681, -inf
        %684 = vmax.xlane.f32.xlu0 %v683
        %v685 = vpop.xlane.xlu0 %684
        %v686 = vsub.f32 %v681, %v685
        %v687 = vmul.f32 %v686, 1.442695
        %v688 = vpow.pop %v687
        %v689 = vsel %vm682, %v688, 0.0
        %690 = vadd.xlane.f32.xlu0 %v689
        %v691 = vpop.xlane.xlu0 %690
        %v692 = vrcp.pop %v691
        %v693 = vmul.f32 %v688, %v692
        %v694 = vpack.c.bf16 %v693, %v693
        %v696 = vsel %vm682, %v694, 0
        %vm698 = vcmask 1043456
        %v700 = vsel %vm698, %v585, 0
        %702 = vmatprep.subr.bf16.mxu0 0
        %703 = vmatpush1.bf16.msra.mxu0 %v700
        %704 = vmatprep.subr.bf16.mxu0 0
        %705 = vmatpush1.bf16.msra.mxu0 0
        %706 = vmatprep.subr.bf16.mxu0 0
        %707 = vmatpush1.bf16.msra.mxu0 0
        %708 = vmatprep.subr.bf16.mxu0 0
        %709 = vmatpush1.bf16.msra.mxu0 0
        %710 = vmatprep.subr.bf16.mxu0 0
        %711 = vmatpush1.bf16.msra.mxu0 0
        %712 = vmatprep.subr.bf16.mxu0 0
        %713 = vmatpush1.bf16.msra.mxu0 0
        %714 = vmatprep.subr.bf16.mxu0 0
        %715 = vmatpush1.bf16.msra.mxu0 0
        %716 = vmatprep.subr.bf16.mxu0 0
        %717 = vmatpush1.bf16.msra.mxu0 0
        %718 = vmatprep.subr.bf16.mxu0 0
        %719 = vmatpush1.bf16.msra.mxu0 0
        %720 = vmatprep.subr.bf16.mxu0 0
        %721 = vmatpush1.bf16.msra.mxu0 0
        %722 = vmatprep.subr.bf16.mxu0 0
        %723 = vmatpush1.bf16.msra.mxu0 0
        %724 = vmatprep.subr.bf16.mxu0 0
        %725 = vmatpush1.bf16.msra.mxu0 0
        %726 = vmatprep.subr.bf16.mxu0 0
        %727 = vmatpush1.bf16.msra.mxu0 0
        %728 = vmatprep.subr.bf16.mxu0 0
        %729 = vmatpush1.bf16.msra.mxu0 0
        %730 = vmatprep.subr.bf16.mxu0 0
        %731 = vmatpush1.bf16.msra.mxu0 0
        %732 = vmatprep.subr.bf16.mxu0 0
        %733 = vmatpush1.bf16.msra.mxu0 0
        %734 = vmatprep.mubr.bf16.mxu0 0
        %735 = vmatmul.mubr.bf16.gmra.mrb[0].mxu0 %v696
        %v736 = vpop.f32.mrb[0].mxu0
        %v737 = vadd.f32 0.0, %v736
        %v738 = vpop.f32.mrb[0].mxu0
        %v739 = vpop.f32.mrb[0].mxu0
        %v740 = vpop.f32.mrb[0].mxu0
        %741 = vdwg.mxu0
        %v742 = vpack.c.bf16 %v737, %v737
        %744 = vrot.lane.b32.xlu0 %v448, 96
        %v745 = vpop.permute.xlu0 %744
        %747 = vrot.lane.b32.xlu0 %v518, 96
        %v748 = vpop.permute.xlu0 %747
        %v750 = vsel %vm403, %v745, 0
        %v753 = vsel %vm403, %v748, 0
        %755 = vmatprep.subr.bf16.mxu0 0
        %756 = vmatpush1.bf16.xpose.msra.mxu0 %v753
        %757 = vmatprep.subr.bf16.mxu0 0
        %758 = vmatpush1.bf16.xpose.msra.mxu0 0
        %759 = vmatprep.subr.bf16.mxu0 0
        %760 = vmatpush1.bf16.xpose.msra.mxu0 0
        %761 = vmatprep.subr.bf16.mxu0 0
        %762 = vmatpush1.bf16.xpose.msra.mxu0 0
        %763 = vmatprep.subr.bf16.mxu0 0
        %764 = vmatpush1.bf16.xpose.msra.mxu0 0
        %765 = vmatprep.subr.bf16.mxu0 0
        %766 = vmatpush1.bf16.xpose.msra.mxu0 0
        %767 = vmatprep.subr.bf16.mxu0 0
        %768 = vmatpush1.bf16.xpose.msra.mxu0 0
        %769 = vmatprep.subr.bf16.mxu0 0
        %770 = vmatpush1.bf16.xpose.msra.mxu0 0
        %771 = vmatprep.subr.bf16.mxu0 0
        %772 = vmatpush1.bf16.xpose.msra.mxu0 0
        %773 = vmatprep.subr.bf16.mxu0 0
        %774 = vmatpush1.bf16.xpose.msra.mxu0 0
        %775 = vmatprep.subr.bf16.mxu0 0
        %776 = vmatpush1.bf16.xpose.msra.mxu0 0
        %777 = vmatprep.subr.bf16.mxu0 0
        %778 = vmatpush1.bf16.xpose.msra.mxu0 0
        %779 = vmatprep.subr.bf16.mxu0 0
        %780 = vmatpush1.bf16.xpose.msra.mxu0 0
        %781 = vmatprep.subr.bf16.mxu0 0
        %782 = vmatpush1.bf16.xpose.msra.mxu0 0
        %783 = vmatprep.subr.bf16.mxu0 0
        %784 = vmatpush1.bf16.xpose.msra.mxu0 0
        %785 = vmatprep.subr.bf16.mxu0 0
        %786 = vmatpush1.bf16.xpose.msra.mxu0 0
        %787 = vmatprep.mubr.bf16.mxu0 0
        %788 = vmatmul.mubr.bf16.gmra.mrb[0].mxu0 %v750
        %v789 = vpop.f32.mrb[0].mxu0
        %v790 = vadd.f32 0.0, %v789
        %v791 = vpop.f32.mrb[0].mxu0
        %v792 = vpop.f32.mrb[0].mxu0
        %v793 = vpop.f32.mrb[0].mxu0
        %794 = vdwg.mxu0
        %v795 = vsel %vm634, -1e+09, %v790
        %v796 = vsel %vm682, %v795, -inf
        %797 = vmax.xlane.f32.xlu0 %v796
        %v798 = vpop.xlane.xlu0 %797
        %v799 = vsub.f32 %v795, %v798
        %v800 = vmul.f32 %v799, 1.442695
        %v801 = vpow.pop %v800
        %v802 = vsel %vm682, %v801, 0.0
        %803 = vadd.xlane.f32.xlu0 %v802
        %v804 = vpop.xlane.xlu0 %803
        %v805 = vrcp.pop %v804
        %v806 = vmul.f32 %v801, %v805
        %v807 = vpack.c.bf16 %v806, %v806
        %809 = vrot.lane.b32.xlu0 %v585, 96
        %v810 = vpop.permute.xlu0 %809
        %v812 = vsel %vm682, %v807, 0
        %v815 = vsel %vm698, %v810, 0
        %817 = vmatprep.subr.bf16.mxu0 0
        %818 = vmatpush1.bf16.msra.mxu0 %v815
        %819 = vmatprep.subr.bf16.mxu0 0
        %820 = vmatpush1.bf16.msra.mxu0 0
        %821 = vmatprep.subr.bf16.mxu0 0
        %822 = vmatpush1.bf16.msra.mxu0 0
        %823 = vmatprep.subr.bf16.mxu0 0
        %824 = vmatpush1.bf16.msra.mxu0 0
        %825 = vmatprep.subr.bf16.mxu0 0
        %826 = vmatpush1.bf16.msra.mxu0 0
        %827 = vmatprep.subr.bf16.mxu0 0
        %828 = vmatpush1.bf16.msra.mxu0 0
        %829 = vmatprep.subr.bf16.mxu0 0
        %830 = vmatpush1.bf16.msra.mxu0 0
        %831 = vmatprep.subr.bf16.mxu0 0
        %832 = vmatpush1.bf16.msra.mxu0 0
        %833 = vmatprep.subr.bf16.mxu0 0
        %834 = vmatpush1.bf16.msra.mxu0 0
        %835 = vmatprep.subr.bf16.mxu0 0
        %836 = vmatpush1.bf16.msra.mxu0 0
        %837 = vmatprep.subr.bf16.mxu0 0
        %838 = vmatpush1.bf16.msra.mxu0 0
        %839 = vmatprep.subr.bf16.mxu0 0
        %840 = vmatpush1.bf16.msra.mxu0 0
        %841 = vmatprep.subr.bf16.mxu0 0
        %842 = vmatpush1.bf16.msra.mxu0 0
        %843 = vmatprep.subr.bf16.mxu0 0
        %844 = vmatpush1.bf16.msra.mxu0 0
        %845 = vmatprep.subr.bf16.mxu0 0
        %846 = vmatpush1.bf16.msra.mxu0 0
        %847 = vmatprep.subr.bf16.mxu0 0
        %848 = vmatpush1.bf16.msra.mxu0 0
        %849 = vmatprep.mubr.bf16.mxu0 0
        %850 = vmatmul.mubr.bf16.gmra.mrb[0].mxu0 %v812
        %v851 = vpop.f32.mrb[0].mxu0
        %v852 = vadd.f32 0.0, %v851
        %v853 = vpop.f32.mrb[0].mxu0
        %v854 = vpop.f32.mrb[0].mxu0
        %v855 = vpop.f32.mrb[0].mxu0
        %856 = vdwg.mxu0
        %v857 = vpack.c.bf16 %v852, %v852
        %v862 = vunpack.c.l.b16 %v591
        %v863 = vunpack.c.l.b16 %v592
        %v864 = vunpack.c.l.b16 %v593
        %v865 = vunpack.c.l.b16 %v594
        %v866 = vpack.c.b16 %v863, %v862
        %v867 = vpack.c.b16 %v865, %v864
        %v871 = vsel %vm403, %v857, 0
        %873 = vmatprep.subr.bf16.mxu0 0
        %874 = vmatpush1.bf16.msra.mxu0 %v866
        %875 = vmatprep.subr.bf16.mxu0 0
        %876 = vmatpush1.bf16.msra.mxu0 %v867
        %877 = vmatprep.subr.bf16.mxu0 0
        %878 = vmatpush1.bf16.msra.mxu0 0
        %879 = vmatprep.subr.bf16.mxu0 0
        %880 = vmatpush1.bf16.msra.mxu0 0
        %881 = vmatprep.subr.bf16.mxu0 0
        %882 = vmatpush1.bf16.msra.mxu0 0
        %883 = vmatprep.subr.bf16.mxu0 0
        %884 = vmatpush1.bf16.msra.mxu0 0
        %885 = vmatprep.subr.bf16.mxu0 0
        %886 = vmatpush1.bf16.msra.mxu0 0
        %887 = vmatprep.subr.bf16.mxu0 0
        %888 = vmatpush1.bf16.msra.mxu0 0
        %889 = vmatprep.subr.bf16.mxu0 0
        %890 = vmatpush1.bf16.msra.mxu0 0
        %891 = vmatprep.subr.bf16.mxu0 0
        %892 = vmatpush1.bf16.msra.mxu0 0
        %893 = vmatprep.subr.bf16.mxu0 0
        %894 = vmatpush1.bf16.msra.mxu0 0
        %895 = vmatprep.subr.bf16.mxu0 0
        %896 = vmatpush1.bf16.msra.mxu0 0
        %897 = vmatprep.subr.bf16.mxu0 0
        %898 = vmatpush1.bf16.msra.mxu0 0
        %899 = vmatprep.subr.bf16.mxu0 0
        %900 = vmatpush1.bf16.msra.mxu0 0
        %901 = vmatprep.subr.bf16.mxu0 0
        %902 = vmatpush1.bf16.msra.mxu0 0
        %903 = vmatprep.subr.bf16.mxu0 0
        %904 = vmatpush1.bf16.msra.mxu0 0
        %905 = vmatprep.mubr.bf16.mxu0 0
        %906 = vmatmul.mubr.bf16.gmra.mrb[0].mxu0 %v871
        %v907 = vpop.f32.mrb[0].mxu0
        %v908 = vadd.f32 0.0, %v907
        %v909 = vpop.f32.mrb[0].mxu0
        %v910 = vpop.f32.mrb[0].mxu0
        %v911 = vpop.f32.mrb[0].mxu0
        %912 = vdwg.mxu0
        %v917 = vunpack.c.l.b16 %v587
        %v918 = vunpack.c.l.b16 %v588
        %v919 = vunpack.c.l.b16 %v589
        %v920 = vunpack.c.l.b16 %v590
        %v921 = vpack.c.b16 %v918, %v917
        %v922 = vpack.c.b16 %v920, %v919
        %v926 = vsel %vm403, %v742, 0
        %928 = vmatprep.subr.bf16.mxu0 0
        %929 = vmatpush1.bf16.msra.mxu0 %v921
        %930 = vmatprep.subr.bf16.mxu0 0
        %931 = vmatpush1.bf16.msra.mxu0 %v922
        %932 = vmatprep.subr.bf16.mxu0 0
        %933 = vmatpush1.bf16.msra.mxu0 0
        %934 = vmatprep.subr.bf16.mxu0 0
        %935 = vmatpush1.bf16.msra.mxu0 0
        %936 = vmatprep.subr.bf16.mxu0 0
        %937 = vmatpush1.bf16.msra.mxu0 0
        %938 = vmatprep.subr.bf16.mxu0 0
        %939 = vmatpush1.bf16.msra.mxu0 0
        %940 = vmatprep.subr.bf16.mxu0 0
        %941 = vmatpush1.bf16.msra.mxu0 0
        %942 = vmatprep.subr.bf16.mxu0 0
        %943 = vmatpush1.bf16.msra.mxu0 0
        %944 = vmatprep.subr.bf16.mxu0 0
        %945 = vmatpush1.bf16.msra.mxu0 0
        %946 = vmatprep.subr.bf16.mxu0 0
        %947 = vmatpush1.bf16.msra.mxu0 0
        %948 = vmatprep.subr.bf16.mxu0 0
        %949 = vmatpush1.bf16.msra.mxu0 0
        %950 = vmatprep.subr.bf16.mxu0 0
        %951 = vmatpush1.bf16.msra.mxu0 0
        %952 = vmatprep.subr.bf16.mxu0 0
        %953 = vmatpush1.bf16.msra.mxu0 0
        %954 = vmatprep.subr.bf16.mxu0 0
        %955 = vmatpush1.bf16.msra.mxu0 0
        %956 = vmatprep.subr.bf16.mxu0 0
        %957 = vmatpush1.bf16.msra.mxu0 0
        %958 = vmatprep.subr.bf16.mxu0 0
        %959 = vmatpush1.bf16.msra.mxu0 0
        %960 = vmatprep.mubr.bf16.mxu0 0
        %961 = vmatmul.mubr.bf16.gmra.mrb[0].mxu0 %v926
        %v962 = vpop.f32.mrb[0].mxu0
        %v963 = vadd.f32 %v908, %v962
        %v964 = vpop.f32.mrb[0].mxu0
        %v965 = vpop.f32.mrb[0].mxu0
        %v966 = vpop.f32.mrb[0].mxu0
        %967 = vdwg.mxu0
        %968 = vrot.lane.b32.xlu0 %v448, 64
        %v969 = vpop.permute.xlu0 %968
        %970 = vrot.lane.b32.xlu0 %v518, 64
        %v971 = vpop.permute.xlu0 %970
        %v973 = vsel %vm403, %v969, 0
        %v976 = vsel %vm403, %v971, 0
        %978 = vmatprep.subr.bf16.mxu0 0
        %979 = vmatpush1.bf16.xpose.msra.mxu0 %v976
        %980 = vmatprep.subr.bf16.mxu0 0
        %981 = vmatpush1.bf16.xpose.msra.mxu0 0
        %982 = vmatprep.subr.bf16.mxu0 0
        %983 = vmatpush1.bf16.xpose.msra.mxu0 0
        %984 = vmatprep.subr.bf16.mxu0 0
        %985 = vmatpush1.bf16.xpose.msra.mxu0 0
        %986 = vmatprep.subr.bf16.mxu0 0
        %987 = vmatpush1.bf16.xpose.msra.mxu0 0
        %988 = vmatprep.subr.bf16.mxu0 0
        %989 = vmatpush1.bf16.xpose.msra.mxu0 0
        %990 = vmatprep.subr.bf16.mxu0 0
        %991 = vmatpush1.bf16.xpose.msra.mxu0 0
        %992 = vmatprep.subr.bf16.mxu0 0
        %993 = vmatpush1.bf16.xpose.msra.mxu0 0
        %994 = vmatprep.subr.bf16.mxu0 0
        %995 = vmatpush1.bf16.xpose.msra.mxu0 0
        %996 = vmatprep.subr.bf16.mxu0 0
        %997 = vmatpush1.bf16.xpose.msra.mxu0 0
        %998 = vmatprep.subr.bf16.mxu0 0
        %999 = vmatpush1.bf16.xpose.msra.mxu0 0
        %1000 = vmatprep.subr.bf16.mxu0 0
        %1001 = vmatpush1.bf16.xpose.msra.mxu0 0
        %1002 = vmatprep.subr.bf16.mxu0 0
        %1003 = vmatpush1.bf16.xpose.msra.mxu0 0
        %1004 = vmatprep.subr.bf16.mxu0 0
        %1005 = vmatpush1.bf16.xpose.msra.mxu0 0
        %1006 = vmatprep.subr.bf16.mxu0 0
        %1007 = vmatpush1.bf16.xpose.msra.mxu0 0
        %1008 = vmatprep.subr.bf16.mxu0 0
        %1009 = vmatpush1.bf16.xpose.msra.mxu0 0
        %1010 = vmatprep.mubr.bf16.mxu0 0
        %1011 = vmatmul.mubr.bf16.gmra.mrb[0].mxu0 %v973
        %v1012 = vpop.f32.mrb[0].mxu0
        %v1013 = vadd.f32 0.0, %v1012
        %v1014 = vpop.f32.mrb[0].mxu0
        %v1015 = vpop.f32.mrb[0].mxu0
        %v1016 = vpop.f32.mrb[0].mxu0
        %1017 = vdwg.mxu0
        %v1018 = vsel %vm634, -1e+09, %v1013
        %v1019 = vsel %vm682, %v1018, -inf
        %1020 = vmax.xlane.f32.xlu0 %v1019
        %v1021 = vpop.xlane.xlu0 %1020
        %v1022 = vsub.f32 %v1018, %v1021
        %v1023 = vmul.f32 %v1022, 1.442695
        %v1024 = vpow.pop %v1023
        %v1025 = vsel %vm682, %v1024, 0.0
        %1026 = vadd.xlane.f32.xlu0 %v1025
        %v1027 = vpop.xlane.xlu0 %1026
        %v1028 = vrcp.pop %v1027
        %v1029 = vmul.f32 %v1024, %v1028
        %v1030 = vpack.c.bf16 %v1029, %v1029
        %1031 = vrot.lane.b32.xlu0 %v585, 64
        %v1032 = vpop.permute.xlu0 %1031
        %v1034 = vsel %vm682, %v1030, 0
        %v1037 = vsel %vm698, %v1032, 0
        %1039 = vmatprep.subr.bf16.mxu0 0
        %1040 = vmatpush1.bf16.msra.mxu0 %v1037
        %1041 = vmatprep.subr.bf16.mxu0 0
        %1042 = vmatpush1.bf16.msra.mxu0 0
        %1043 = vmatprep.subr.bf16.mxu0 0
        %1044 = vmatpush1.bf16.msra.mxu0 0
        %1045 = vmatprep.subr.bf16.mxu0 0
        %1046 = vmatpush1.bf16.msra.mxu0 0
        %1047 = vmatprep.subr.bf16.mxu0 0
        %1048 = vmatpush1.bf16.msra.mxu0 0
        %1049 = vmatprep.subr.bf16.mxu0 0
        %1050 = vmatpush1.bf16.msra.mxu0 0
        %1051 = vmatprep.subr.bf16.mxu0 0
        %1052 = vmatpush1.bf16.msra.mxu0 0
        %1053 = vmatprep.subr.bf16.mxu0 0
        %1054 = vmatpush1.bf16.msra.mxu0 0
        %1055 = vmatprep.subr.bf16.mxu0 0
        %1056 = vmatpush1.bf16.msra.mxu0 0
        %1057 = vmatprep.subr.bf16.mxu0 0
        %1058 = vmatpush1.bf16.msra.mxu0 0
        %1059 = vmatprep.subr.bf16.mxu0 0
        %1060 = vmatpush1.bf16.msra.mxu0 0
        %1061 = vmatprep.subr.bf16.mxu0 0
        %1062 = vmatpush1.bf16.msra.mxu0 0
        %1063 = vmatprep.subr.bf16.mxu0 0
        %1064 = vmatpush1.bf16.msra.mxu0 0
        %1065 = vmatprep.subr.bf16.mxu0 0
        %1066 = vmatpush1.bf16.msra.mxu0 0
        %1067 = vmatprep.subr.bf16.mxu0 0
        %1068 = vmatpush1.bf16.msra.mxu0 0
        %1069 = vmatprep.subr.bf16.mxu0 0
        %1070 = vmatpush1.bf16.msra.mxu0 0
        %1071 = vmatprep.mubr.bf16.mxu0 0
        %1072 = vmatmul.mubr.bf16.gmra.mrb[0].mxu0 %v1034
        %v1073 = vpop.f32.mrb[0].mxu0
        %v1074 = vadd.f32 0.0, %v1073
        %v1075 = vpop.f32.mrb[0].mxu0
        %v1076 = vpop.f32.mrb[0].mxu0
        %v1077 = vpop.f32.mrb[0].mxu0
        %1078 = vdwg.mxu0
        %v1079 = vpack.c.bf16 %v1074, %v1074
        %v1084 = vunpack.c.l.b16 %v595
        %v1085 = vunpack.c.l.b16 %v596
        %v1086 = vunpack.c.l.b16 %v597
        %v1087 = vunpack.c.l.b16 %v598
        %v1088 = vpack.c.b16 %v1085, %v1084
        %v1089 = vpack.c.b16 %v1087, %v1086
        %v1093 = vsel %vm403, %v1079, 0
        %1095 = vmatprep.subr.bf16.mxu0 0
        %1096 = vmatpush1.bf16.msra.mxu0 %v1088
        %1097 = vmatprep.subr.bf16.mxu0 0
        %1098 = vmatpush1.bf16.msra.mxu0 %v1089
        %1099 = vmatprep.subr.bf16.mxu0 0
        %1100 = vmatpush1.bf16.msra.mxu0 0
        %1101 = vmatprep.subr.bf16.mxu0 0
        %1102 = vmatpush1.bf16.msra.mxu0 0
        %1103 = vmatprep.subr.bf16.mxu0 0
        %1104 = vmatpush1.bf16.msra.mxu0 0
        %1105 = vmatprep.subr.bf16.mxu0 0
        %1106 = vmatpush1.bf16.msra.mxu0 0
        %1107 = vmatprep.subr.bf16.mxu0 0
        %1108 = vmatpush1.bf16.msra.mxu0 0
        %1109 = vmatprep.subr.bf16.mxu0 0
        %1110 = vmatpush1.bf16.msra.mxu0 0
        %1111 = vmatprep.subr.bf16.mxu0 0
        %1112 = vmatpush1.bf16.msra.mxu0 0
        %1113 = vmatprep.subr.bf16.mxu0 0
        %1114 = vmatpush1.bf16.msra.mxu0 0
        %1115 = vmatprep.subr.bf16.mxu0 0
        %1116 = vmatpush1.bf16.msra.mxu0 0
        %1117 = vmatprep.subr.bf16.mxu0 0
        %1118 = vmatpush1.bf16.msra.mxu0 0
        %1119 = vmatprep.subr.bf16.mxu0 0
        %1120 = vmatpush1.bf16.msra.mxu0 0
        %1121 = vmatprep.subr.bf16.mxu0 0
        %1122 = vmatpush1.bf16.msra.mxu0 0
        %1123 = vmatprep.subr.bf16.mxu0 0
        %1124 = vmatpush1.bf16.msra.mxu0 0
        %1125 = vmatprep.subr.bf16.mxu0 0
        %1126 = vmatpush1.bf16.msra.mxu0 0
        %1127 = vmatprep.mubr.bf16.mxu0 0
        %1128 = vmatmul.mubr.bf16.gmra.mrb[0].mxu0 %v1093
        %v1129 = vpop.f32.mrb[0].mxu0
        %v1130 = vadd.f32 0.0, %v1129
        %v1131 = vpop.f32.mrb[0].mxu0
        %v1132 = vpop.f32.mrb[0].mxu0
        %v1133 = vpop.f32.mrb[0].mxu0
        %1134 = vdwg.mxu0
        %v1135 = vadd.f32 %v963, %v1130
        %1136 = vrot.lane.b32.xlu0 %v448, 32
        %v1137 = vpop.permute.xlu0 %1136
        %1138 = vrot.lane.b32.xlu0 %v518, 32
        %v1139 = vpop.permute.xlu0 %1138
        %v1141 = vsel %vm403, %v1137, 0
        %v1144 = vsel %vm403, %v1139, 0
        %1146 = vmatprep.subr.bf16.mxu0 0
        %1147 = vmatpush1.bf16.xpose.msra.mxu0 %v1144
        %1148 = vmatprep.subr.bf16.mxu0 0
        %1149 = vmatpush1.bf16.xpose.msra.mxu0 0
        %1150 = vmatprep.subr.bf16.mxu0 0
        %1151 = vmatpush1.bf16.xpose.msra.mxu0 0
        %1152 = vmatprep.subr.bf16.mxu0 0
        %1153 = vmatpush1.bf16.xpose.msra.mxu0 0
        %1154 = vmatprep.subr.bf16.mxu0 0
        %1155 = vmatpush1.bf16.xpose.msra.mxu0 0
        %1156 = vmatprep.subr.bf16.mxu0 0
        %1157 = vmatpush1.bf16.xpose.msra.mxu0 0
        %1158 = vmatprep.subr.bf16.mxu0 0
        %1159 = vmatpush1.bf16.xpose.msra.mxu0 0
        %1160 = vmatprep.subr.bf16.mxu0 0
        %1161 = vmatpush1.bf16.xpose.msra.mxu0 0
        %1162 = vmatprep.subr.bf16.mxu0 0
        %1163 = vmatpush1.bf16.xpose.msra.mxu0 0
        %1164 = vmatprep.subr.bf16.mxu0 0
        %1165 = vmatpush1.bf16.xpose.msra.mxu0 0
        %1166 = vmatprep.subr.bf16.mxu0 0
        %1167 = vmatpush1.bf16.xpose.msra.mxu0 0
        %1168 = vmatprep.subr.bf16.mxu0 0
        %1169 = vmatpush1.bf16.xpose.msra.mxu0 0
        %1170 = vmatprep.subr.bf16.mxu0 0
        %1171 = vmatpush1.bf16.xpose.msra.mxu0 0
        %1172 = vmatprep.subr.bf16.mxu0 0
        %1173 = vmatpush1.bf16.xpose.msra.mxu0 0
        %1174 = vmatprep.subr.bf16.mxu0 0
        %1175 = vmatpush1.bf16.xpose.msra.mxu0 0
        %1176 = vmatprep.subr.bf16.mxu0 0
        %1177 = vmatpush1.bf16.xpose.msra.mxu0 0
        %1178 = vmatprep.mubr.bf16.mxu0 0
        %1179 = vmatmul.mubr.bf16.gmra.mrb[0].mxu0 %v1141
        %v1180 = vpop.f32.mrb[0].mxu0
        %v1181 = vadd.f32 0.0, %v1180
        %v1182 = vpop.f32.mrb[0].mxu0
        %v1183 = vpop.f32.mrb[0].mxu0
        %v1184 = vpop.f32.mrb[0].mxu0
        %1185 = vdwg.mxu0
        %v1186 = vsel %vm634, -1e+09, %v1181
        %v1187 = vsel %vm682, %v1186, -inf
        %1188 = vmax.xlane.f32.xlu0 %v1187
        %v1189 = vpop.xlane.xlu0 %1188
        %v1190 = vsub.f32 %v1186, %v1189
        %v1191 = vmul.f32 %v1190, 1.442695
        %v1192 = vpow.pop %v1191
        %v1193 = vsel %vm682, %v1192, 0.0
        %1194 = vadd.xlane.f32.xlu0 %v1193
        %v1195 = vpop.xlane.xlu0 %1194
        %v1196 = vrcp.pop %v1195
        %v1197 = vmul.f32 %v1192, %v1196
        %v1198 = vpack.c.bf16 %v1197, %v1197
        %1199 = vrot.lane.b32.xlu0 %v585, 32
        %v1200 = vpop.permute.xlu0 %1199
        %v1202 = vsel %vm682, %v1198, 0
        %v1205 = vsel %vm698, %v1200, 0
        %1207 = vmatprep.subr.bf16.mxu0 0
        %1208 = vmatpush1.bf16.msra.mxu0 %v1205
        %1209 = vmatprep.subr.bf16.mxu0 0
        %1210 = vmatpush1.bf16.msra.mxu0 0
        %1211 = vmatprep.subr.bf16.mxu0 0
        %1212 = vmatpush1.bf16.msra.mxu0 0
        %1213 = vmatprep.subr.bf16.mxu0 0
        %1214 = vmatpush1.bf16.msra.mxu0 0
        %1215 = vmatprep.subr.bf16.mxu0 0
        %1216 = vmatpush1.bf16.msra.mxu0 0
        %1217 = vmatprep.subr.bf16.mxu0 0
        %1218 = vmatpush1.bf16.msra.mxu0 0
        %1219 = vmatprep.subr.bf16.mxu0 0
        %1220 = vmatpush1.bf16.msra.mxu0 0
        %1221 = vmatprep.subr.bf16.mxu0 0
        %1222 = vmatpush1.bf16.msra.mxu0 0
        %1223 = vmatprep.subr.bf16.mxu0 0
        %1224 = vmatpush1.bf16.msra.mxu0 0
        %1225 = vmatprep.subr.bf16.mxu0 0
        %1226 = vmatpush1.bf16.msra.mxu0 0
        %1227 = vmatprep.subr.bf16.mxu0 0
        %1228 = vmatpush1.bf16.msra.mxu0 0
        %1229 = vmatprep.subr.bf16.mxu0 0
        %1230 = vmatpush1.bf16.msra.mxu0 0
        %1231 = vmatprep.subr.bf16.mxu0 0
        %1232 = vmatpush1.bf16.msra.mxu0 0
        %1233 = vmatprep.subr.bf16.mxu0 0
        %1234 = vmatpush1.bf16.msra.mxu0 0
        %1235 = vmatprep.subr.bf16.mxu0 0
        %1236 = vmatpush1.bf16.msra.mxu0 0
        %1237 = vmatprep.subr.bf16.mxu0 0
        %1238 = vmatpush1.bf16.msra.mxu0 0
        %1239 = vmatprep.mubr.bf16.mxu0 0
        %1240 = vmatmul.mubr.bf16.gmra.mrb[0].mxu0 %v1202
        %v1241 = vpop.f32.mrb[0].mxu0
        %v1242 = vadd.f32 0.0, %v1241
        %v1243 = vpop.f32.mrb[0].mxu0
        %v1244 = vpop.f32.mrb[0].mxu0
        %v1245 = vpop.f32.mrb[0].mxu0
        %1246 = vdwg.mxu0
        %v1247 = vpack.c.bf16 %v1242, %v1242
        %v1252 = vunpack.c.l.b16 %v599
        %v1253 = vunpack.c.l.b16 %v600
        %v1254 = vunpack.c.l.b16 %v601
        %v1255 = vunpack.c.l.b16 %v602
        %v1256 = vpack.c.b16 %v1253, %v1252
        %v1257 = vpack.c.b16 %v1255, %v1254
        %v1261 = vsel %vm403, %v1247, 0
        %1263 = vmatprep.subr.bf16.mxu0 0
        %1264 = vmatpush1.bf16.msra.mxu0 %v1256
        %1265 = vmatprep.subr.bf16.mxu0 0
        %1266 = vmatpush1.bf16.msra.mxu0 %v1257
        %1267 = vmatprep.subr.bf16.mxu0 0
        %1268 = vmatpush1.bf16.msra.mxu0 0
        %1269 = vmatprep.subr.bf16.mxu0 0
        %1270 = vmatpush1.bf16.msra.mxu0 0
        %1271 = vmatprep.subr.bf16.mxu0 0
        %1272 = vmatpush1.bf16.msra.mxu0 0
        %1273 = vmatprep.subr.bf16.mxu0 0
        %1274 = vmatpush1.bf16.msra.mxu0 0
        %1275 = vmatprep.subr.bf16.mxu0 0
        %1276 = vmatpush1.bf16.msra.mxu0 0
        %1277 = vmatprep.subr.bf16.mxu0 0
        %1278 = vmatpush1.bf16.msra.mxu0 0
        %1279 = vmatprep.subr.bf16.mxu0 0
        %1280 = vmatpush1.bf16.msra.mxu0 0
        %1281 = vmatprep.subr.bf16.mxu0 0
        %1282 = vmatpush1.bf16.msra.mxu0 0
        %1283 = vmatprep.subr.bf16.mxu0 0
        %1284 = vmatpush1.bf16.msra.mxu0 0
        %1285 = vmatprep.subr.bf16.mxu0 0
        %1286 = vmatpush1.bf16.msra.mxu0 0
        %1287 = vmatprep.subr.bf16.mxu0 0
        %1288 = vmatpush1.bf16.msra.mxu0 0
        %1289 = vmatprep.subr.bf16.mxu0 0
        %1290 = vmatpush1.bf16.msra.mxu0 0
        %1291 = vmatprep.subr.bf16.mxu0 0
        %1292 = vmatpush1.bf16.msra.mxu0 0
        %1293 = vmatprep.subr.bf16.mxu0 0
        %1294 = vmatpush1.bf16.msra.mxu0 0
        %1295 = vmatprep.mubr.bf16.mxu0 0
        %1296 = vmatmul.mubr.bf16.gmra.mrb[0].mxu0 %v1261
        %v1297 = vpop.f32.mrb[0].mxu0
        %v1298 = vadd.f32 0.0, %v1297
        %v1299 = vpop.f32.mrb[0].mxu0
        %v1300 = vpop.f32.mrb[0].mxu0
        %v1301 = vpop.f32.mrb[0].mxu0
        %1302 = vdwg.mxu0
        %v1303 = vadd.f32 %v1135, %v1298
        %v1305 = vsel %vm403, %v449, 0
        %v1308 = vsel %vm403, %v519, 0
        %1310 = vmatprep.subr.bf16.mxu0 0
        %1311 = vmatpush1.bf16.xpose.msra.mxu0 %v1308
        %1312 = vmatprep.subr.bf16.mxu0 0
        %1313 = vmatpush1.bf16.xpose.msra.mxu0 0
        %1314 = vmatprep.subr.bf16.mxu0 0
        %1315 = vmatpush1.bf16.xpose.msra.mxu0 0
        %1316 = vmatprep.subr.bf16.mxu0 0
        %1317 = vmatpush1.bf16.xpose.msra.mxu0 0
        %1318 = vmatprep.subr.bf16.mxu0 0
        %1319 = vmatpush1.bf16.xpose.msra.mxu0 0
        %1320 = vmatprep.subr.bf16.mxu0 0
        %1321 = vmatpush1.bf16.xpose.msra.mxu0 0
        %1322 = vmatprep.subr.bf16.mxu0 0
        %1323 = vmatpush1.bf16.xpose.msra.mxu0 0
        %1324 = vmatprep.subr.bf16.mxu0 0
        %1325 = vmatpush1.bf16.xpose.msra.mxu0 0
        %1326 = vmatprep.subr.bf16.mxu0 0
        %1327 = vmatpush1.bf16.xpose.msra.mxu0 0
        %1328 = vmatprep.subr.bf16.mxu0 0
        %1329 = vmatpush1.bf16.xpose.msra.mxu0 0
        %1330 = vmatprep.subr.bf16.mxu0 0
        %1331 = vmatpush1.bf16.xpose.msra.mxu0 0
        %1332 = vmatprep.subr.bf16.mxu0 0
        %1333 = vmatpush1.bf16.xpose.msra.mxu0 0
        %1334 = vmatprep.subr.bf16.mxu0 0
        %1335 = vmatpush1.bf16.xpose.msra.mxu0 0
        %1336 = vmatprep.subr.bf16.mxu0 0
        %1337 = vmatpush1.bf16.xpose.msra.mxu0 0
        %1338 = vmatprep.subr.bf16.mxu0 0
        %1339 = vmatpush1.bf16.xpose.msra.mxu0 0
        %1340 = vmatprep.subr.bf16.mxu0 0
        %1341 = vmatpush1.bf16.xpose.msra.mxu0 0
        %1342 = vmatprep.mubr.bf16.mxu0 0
        %1343 = vmatmul.mubr.bf16.gmra.mrb[0].mxu0 %v1305
        %v1344 = vpop.f32.mrb[0].mxu0
        %v1345 = vadd.f32 0.0, %v1344
        %v1346 = vpop.f32.mrb[0].mxu0
        %v1347 = vpop.f32.mrb[0].mxu0
        %v1348 = vpop.f32.mrb[0].mxu0
        %1349 = vdwg.mxu0
        %v1350 = vsel %vm634, -1e+09, %v1345
        %v1351 = vsel %vm682, %v1350, -inf
        %1352 = vmax.xlane.f32.xlu0 %v1351
        %v1353 = vpop.xlane.xlu0 %1352
        %v1354 = vsub.f32 %v1350, %v1353
        %v1355 = vmul.f32 %v1354, 1.442695
        %v1356 = vpow.pop %v1355
        %v1357 = vsel %vm682, %v1356, 0.0
        %1358 = vadd.xlane.f32.xlu0 %v1357
        %v1359 = vpop.xlane.xlu0 %1358
        %v1360 = vrcp.pop %v1359
        %v1361 = vmul.f32 %v1356, %v1360
        %v1362 = vpack.c.bf16 %v1361, %v1361
        %v1364 = vsel %vm682, %v1362, 0
        %v1367 = vsel %vm698, %v586, 0
        %1369 = vmatprep.subr.bf16.mxu0 0
        %1370 = vmatpush1.bf16.msra.mxu0 %v1367
        %1371 = vmatprep.subr.bf16.mxu0 0
        %1372 = vmatpush1.bf16.msra.mxu0 0
        %1373 = vmatprep.subr.bf16.mxu0 0
        %1374 = vmatpush1.bf16.msra.mxu0 0
        %1375 = vmatprep.subr.bf16.mxu0 0
        %1376 = vmatpush1.bf16.msra.mxu0 0
        %1377 = vmatprep.subr.bf16.mxu0 0
        %1378 = vmatpush1.bf16.msra.mxu0 0
        %1379 = vmatprep.subr.bf16.mxu0 0
        %1380 = vmatpush1.bf16.msra.mxu0 0
        %1381 = vmatprep.subr.bf16.mxu0 0
        %1382 = vmatpush1.bf16.msra.mxu0 0
        %1383 = vmatprep.subr.bf16.mxu0 0
        %1384 = vmatpush1.bf16.msra.mxu0 0
        %1385 = vmatprep.subr.bf16.mxu0 0
        %1386 = vmatpush1.bf16.msra.mxu0 0
        %1387 = vmatprep.subr.bf16.mxu0 0
        %1388 = vmatpush1.bf16.msra.mxu0 0
        %1389 = vmatprep.subr.bf16.mxu0 0
        %1390 = vmatpush1.bf16.msra.mxu0 0
        %1391 = vmatprep.subr.bf16.mxu0 0
        %1392 = vmatpush1.bf16.msra.mxu0 0
        %1393 = vmatprep.subr.bf16.mxu0 0
        %1394 = vmatpush1.bf16.msra.mxu0 0
        %1395 = vmatprep.subr.bf16.mxu0 0
        %1396 = vmatpush1.bf16.msra.mxu0 0
        %1397 = vmatprep.subr.bf16.mxu0 0
        %1398 = vmatpush1.bf16.msra.mxu0 0
        %1399 = vmatprep.subr.bf16.mxu0 0
        %1400 = vmatpush1.bf16.msra.mxu0 0
        %1401 = vmatprep.mubr.bf16.mxu0 0
        %1402 = vmatmul.mubr.bf16.gmra.mrb[0].mxu0 %v1364
        %v1403 = vpop.f32.mrb[0].mxu0
        %v1404 = vadd.f32 0.0, %v1403
        %v1405 = vpop.f32.mrb[0].mxu0
        %v1406 = vpop.f32.mrb[0].mxu0
        %v1407 = vpop.f32.mrb[0].mxu0
        %1408 = vdwg.mxu0
        %v1409 = vpack.c.bf16 %v1404, %v1404
        %v1414 = vunpack.c.l.b16 %v603
        %v1415 = vunpack.c.l.b16 %v604
        %v1416 = vunpack.c.l.b16 %v605
        %v1417 = vunpack.c.l.b16 %v606
        %v1418 = vpack.c.b16 %v1415, %v1414
        %v1419 = vpack.c.b16 %v1417, %v1416
        %v1423 = vsel %vm403, %v1409, 0
        %1425 = vmatprep.subr.bf16.mxu0 0
        %1426 = vmatpush1.bf16.msra.mxu0 %v1418
        %1427 = vmatprep.subr.bf16.mxu0 0
        %1428 = vmatpush1.bf16.msra.mxu0 %v1419
        %1429 = vmatprep.subr.bf16.mxu0 0
        %1430 = vmatpush1.bf16.msra.mxu0 0
        %1431 = vmatprep.subr.bf16.mxu0 0
        %1432 = vmatpush1.bf16.msra.mxu0 0
        %1433 = vmatprep.subr.bf16.mxu0 0
        %1434 = vmatpush1.bf16.msra.mxu0 0
        %1435 = vmatprep.subr.bf16.mxu0 0
        %1436 = vmatpush1.bf16.msra.mxu0 0
        %1437 = vmatprep.subr.bf16.mxu0 0
        %1438 = vmatpush1.bf16.msra.mxu0 0
        %1439 = vmatprep.subr.bf16.mxu0 0
        %1440 = vmatpush1.bf16.msra.mxu0 0
        %1441 = vmatprep.subr.bf16.mxu0 0
        %1442 = vmatpush1.bf16.msra.mxu0 0
        %1443 = vmatprep.subr.bf16.mxu0 0
        %1444 = vmatpush1.bf16.msra.mxu0 0
        %1445 = vmatprep.subr.bf16.mxu0 0
        %1446 = vmatpush1.bf16.msra.mxu0 0
        %1447 = vmatprep.subr.bf16.mxu0 0
        %1448 = vmatpush1.bf16.msra.mxu0 0
        %1449 = vmatprep.subr.bf16.mxu0 0
        %1450 = vmatpush1.bf16.msra.mxu0 0
        %1451 = vmatprep.subr.bf16.mxu0 0
        %1452 = vmatpush1.bf16.msra.mxu0 0
        %1453 = vmatprep.subr.bf16.mxu0 0
        %1454 = vmatpush1.bf16.msra.mxu0 0
        %1455 = vmatprep.subr.bf16.mxu0 0
        %1456 = vmatpush1.bf16.msra.mxu0 0
        %1457 = vmatprep.mubr.bf16.mxu0 0
        %1458 = vmatmul.mubr.bf16.gmra.mrb[0].mxu0 %v1423
        %v1459 = vpop.f32.mrb[0].mxu0
        %v1460 = vadd.f32 0.0, %v1459
        %v1461 = vpop.f32.mrb[0].mxu0
        %v1462 = vpop.f32.mrb[0].mxu0
        %v1463 = vpop.f32.mrb[0].mxu0
        %1464 = vdwg.mxu0
        %v1465 = vadd.f32 %v1303, %v1460
        %1467 = vrot.lane.b32.xlu0 %v449, 96
        %v1468 = vpop.permute.xlu0 %1467
        %1470 = vrot.lane.b32.xlu0 %v519, 96
        %v1471 = vpop.permute.xlu0 %1470
        %v1473 = vsel %vm403, %v1468, 0
        %v1476 = vsel %vm403, %v1471, 0
        %1478 = vmatprep.subr.bf16.mxu0 0
        %1479 = vmatpush1.bf16.xpose.msra.mxu0 %v1476
        %1480 = vmatprep.subr.bf16.mxu0 0
        %1481 = vmatpush1.bf16.xpose.msra.mxu0 0
        %1482 = vmatprep.subr.bf16.mxu0 0
        %1483 = vmatpush1.bf16.xpose.msra.mxu0 0
        %1484 = vmatprep.subr.bf16.mxu0 0
        %1485 = vmatpush1.bf16.xpose.msra.mxu0 0
        %1486 = vmatprep.subr.bf16.mxu0 0
        %1487 = vmatpush1.bf16.xpose.msra.mxu0 0
        %1488 = vmatprep.subr.bf16.mxu0 0
        %1489 = vmatpush1.bf16.xpose.msra.mxu0 0
        %1490 = vmatprep.subr.bf16.mxu0 0
        %1491 = vmatpush1.bf16.xpose.msra.mxu0 0
        %1492 = vmatprep.subr.bf16.mxu0 0
        %1493 = vmatpush1.bf16.xpose.msra.mxu0 0
        %1494 = vmatprep.subr.bf16.mxu0 0
        %1495 = vmatpush1.bf16.xpose.msra.mxu0 0
        %1496 = vmatprep.subr.bf16.mxu0 0
        %1497 = vmatpush1.bf16.xpose.msra.mxu0 0
        %1498 = vmatprep.subr.bf16.mxu0 0
        %1499 = vmatpush1.bf16.xpose.msra.mxu0 0
        %1500 = vmatprep.subr.bf16.mxu0 0
        %1501 = vmatpush1.bf16.xpose.msra.mxu0 0
        %1502 = vmatprep.subr.bf16.mxu0 0
        %1503 = vmatpush1.bf16.xpose.msra.mxu0 0
        %1504 = vmatprep.subr.bf16.mxu0 0
        %1505 = vmatpush1.bf16.xpose.msra.mxu0 0
        %1506 = vmatprep.subr.bf16.mxu0 0
        %1507 = vmatpush1.bf16.xpose.msra.mxu0 0
        %1508 = vmatprep.subr.bf16.mxu0 0
        %1509 = vmatpush1.bf16.xpose.msra.mxu0 0
        %1510 = vmatprep.mubr.bf16.mxu0 0
        %1511 = vmatmul.mubr.bf16.gmra.mrb[0].mxu0 %v1473
        %v1512 = vpop.f32.mrb[0].mxu0
        %v1513 = vadd.f32 0.0, %v1512
        %v1514 = vpop.f32.mrb[0].mxu0
        %v1515 = vpop.f32.mrb[0].mxu0
        %v1516 = vpop.f32.mrb[0].mxu0
        %1517 = vdwg.mxu0
        %v1518 = vsel %vm634, -1e+09, %v1513
        %v1519 = vsel %vm682, %v1518, -inf
        %1520 = vmax.xlane.f32.xlu0 %v1519
        %v1521 = vpop.xlane.xlu0 %1520
        %v1522 = vsub.f32 %v1518, %v1521
        %v1523 = vmul.f32 %v1522, 1.442695
        %v1524 = vpow.pop %v1523
        %v1525 = vsel %vm682, %v1524, 0.0
        %1526 = vadd.xlane.f32.xlu0 %v1525
        %v1527 = vpop.xlane.xlu0 %1526
        %v1528 = vrcp.pop %v1527
        %v1529 = vmul.f32 %v1524, %v1528
        %v1530 = vpack.c.bf16 %v1529, %v1529
        %1532 = vrot.lane.b32.xlu0 %v586, 96
        %v1533 = vpop.permute.xlu0 %1532
        %v1535 = vsel %vm682, %v1530, 0
        %v1538 = vsel %vm698, %v1533, 0
        %1540 = vmatprep.subr.bf16.mxu0 0
        %1541 = vmatpush1.bf16.msra.mxu0 %v1538
        %1542 = vmatprep.subr.bf16.mxu0 0
        %1543 = vmatpush1.bf16.msra.mxu0 0
        %1544 = vmatprep.subr.bf16.mxu0 0
        %1545 = vmatpush1.bf16.msra.mxu0 0
        %1546 = vmatprep.subr.bf16.mxu0 0
        %1547 = vmatpush1.bf16.msra.mxu0 0
        %1548 = vmatprep.subr.bf16.mxu0 0
        %1549 = vmatpush1.bf16.msra.mxu0 0
        %1550 = vmatprep.subr.bf16.mxu0 0
        %1551 = vmatpush1.bf16.msra.mxu0 0
        %1552 = vmatprep.subr.bf16.mxu0 0
        %1553 = vmatpush1.bf16.msra.mxu0 0
        %1554 = vmatprep.subr.bf16.mxu0 0
        %1555 = vmatpush1.bf16.msra.mxu0 0
        %1556 = vmatprep.subr.bf16.mxu0 0
        %1557 = vmatpush1.bf16.msra.mxu0 0
        %1558 = vmatprep.subr.bf16.mxu0 0
        %1559 = vmatpush1.bf16.msra.mxu0 0
        %1560 = vmatprep.subr.bf16.mxu0 0
        %1561 = vmatpush1.bf16.msra.mxu0 0
        %1562 = vmatprep.subr.bf16.mxu0 0
        %1563 = vmatpush1.bf16.msra.mxu0 0
        %1564 = vmatprep.subr.bf16.mxu0 0
        %1565 = vmatpush1.bf16.msra.mxu0 0
        %1566 = vmatprep.subr.bf16.mxu0 0
        %1567 = vmatpush1.bf16.msra.mxu0 0
        %1568 = vmatprep.subr.bf16.mxu0 0
        %1569 = vmatpush1.bf16.msra.mxu0 0
        %1570 = vmatprep.subr.bf16.mxu0 0
        %1571 = vmatpush1.bf16.msra.mxu0 0
        %1572 = vmatprep.mubr.bf16.mxu0 0
        %1573 = vmatmul.mubr.bf16.gmra.mrb[0].mxu0 %v1535
        %v1574 = vpop.f32.mrb[0].mxu0
        %v1575 = vadd.f32 0.0, %v1574
        %v1576 = vpop.f32.mrb[0].mxu0
        %v1577 = vpop.f32.mrb[0].mxu0
        %v1578 = vpop.f32.mrb[0].mxu0
        %1579 = vdwg.mxu0
        %v1580 = vpack.c.bf16 %v1575, %v1575
        %v1585 = vunpack.c.l.b16 %v607
        %v1586 = vunpack.c.l.b16 %v608
        %v1587 = vunpack.c.l.b16 %v609
        %v1588 = vunpack.c.l.b16 %v610
        %v1589 = vpack.c.b16 %v1586, %v1585
        %v1590 = vpack.c.b16 %v1588, %v1587
        %v1594 = vsel %vm403, %v1580, 0
        %1596 = vmatprep.subr.bf16.mxu0 0
        %1597 = vmatpush1.bf16.msra.mxu0 %v1589
        %1598 = vmatprep.subr.bf16.mxu0 0
        %1599 = vmatpush1.bf16.msra.mxu0 %v1590
        %1600 = vmatprep.subr.bf16.mxu0 0
        %1601 = vmatpush1.bf16.msra.mxu0 0
        %1602 = vmatprep.subr.bf16.mxu0 0
        %1603 = vmatpush1.bf16.msra.mxu0 0
        %1604 = vmatprep.subr.bf16.mxu0 0
        %1605 = vmatpush1.bf16.msra.mxu0 0
        %1606 = vmatprep.subr.bf16.mxu0 0
        %1607 = vmatpush1.bf16.msra.mxu0 0
        %1608 = vmatprep.subr.bf16.mxu0 0
        %1609 = vmatpush1.bf16.msra.mxu0 0
        %1610 = vmatprep.subr.bf16.mxu0 0
        %1611 = vmatpush1.bf16.msra.mxu0 0
        %1612 = vmatprep.subr.bf16.mxu0 0
        %1613 = vmatpush1.bf16.msra.mxu0 0
        %1614 = vmatprep.subr.bf16.mxu0 0
        %1615 = vmatpush1.bf16.msra.mxu0 0
        %1616 = vmatprep.subr.bf16.mxu0 0
        %1617 = vmatpush1.bf16.msra.mxu0 0
        %1618 = vmatprep.subr.bf16.mxu0 0
        %1619 = vmatpush1.bf16.msra.mxu0 0
        %1620 = vmatprep.subr.bf16.mxu0 0
        %1621 = vmatpush1.bf16.msra.mxu0 0
        %1622 = vmatprep.subr.bf16.mxu0 0
        %1623 = vmatpush1.bf16.msra.mxu0 0
        %1624 = vmatprep.subr.bf16.mxu0 0
        %1625 = vmatpush1.bf16.msra.mxu0 0
        %1626 = vmatprep.subr.bf16.mxu0 0
        %1627 = vmatpush1.bf16.msra.mxu0 0
        %1628 = vmatprep.mubr.bf16.mxu0 0
        %1629 = vmatmul.mubr.bf16.gmra.mrb[0].mxu0 %v1594
        %v1630 = vpop.f32.mrb[0].mxu0
        %v1631 = vadd.f32 0.0, %v1630
        %v1632 = vpop.f32.mrb[0].mxu0
        %v1633 = vpop.f32.mrb[0].mxu0
        %v1634 = vpop.f32.mrb[0].mxu0
        %1635 = vdwg.mxu0
        %v1636 = vadd.f32 %v1465, %v1631
        %1637 = vrot.lane.b32.xlu0 %v449, 64
        %v1638 = vpop.permute.xlu0 %1637
        %1639 = vrot.lane.b32.xlu0 %v519, 64
        %v1640 = vpop.permute.xlu0 %1639
        %v1642 = vsel %vm403, %v1638, 0
        %v1645 = vsel %vm403, %v1640, 0
        %1647 = vmatprep.subr.bf16.mxu0 0
        %1648 = vmatpush1.bf16.xpose.msra.mxu0 %v1645
        %1649 = vmatprep.subr.bf16.mxu0 0
        %1650 = vmatpush1.bf16.xpose.msra.mxu0 0
        %1651 = vmatprep.subr.bf16.mxu0 0
        %1652 = vmatpush1.bf16.xpose.msra.mxu0 0
        %1653 = vmatprep.subr.bf16.mxu0 0
        %1654 = vmatpush1.bf16.xpose.msra.mxu0 0
        %1655 = vmatprep.subr.bf16.mxu0 0
        %1656 = vmatpush1.bf16.xpose.msra.mxu0 0
        %1657 = vmatprep.subr.bf16.mxu0 0
        %1658 = vmatpush1.bf16.xpose.msra.mxu0 0
        %1659 = vmatprep.subr.bf16.mxu0 0
        %1660 = vmatpush1.bf16.xpose.msra.mxu0 0
        %1661 = vmatprep.subr.bf16.mxu0 0
        %1662 = vmatpush1.bf16.xpose.msra.mxu0 0
        %1663 = vmatprep.subr.bf16.mxu0 0
        %1664 = vmatpush1.bf16.xpose.msra.mxu0 0
        %1665 = vmatprep.subr.bf16.mxu0 0
        %1666 = vmatpush1.bf16.xpose.msra.mxu0 0
        %1667 = vmatprep.subr.bf16.mxu0 0
        %1668 = vmatpush1.bf16.xpose.msra.mxu0 0
        %1669 = vmatprep.subr.bf16.mxu0 0
        %1670 = vmatpush1.bf16.xpose.msra.mxu0 0
        %1671 = vmatprep.subr.bf16.mxu0 0
        %1672 = vmatpush1.bf16.xpose.msra.mxu0 0
        %1673 = vmatprep.subr.bf16.mxu0 0
        %1674 = vmatpush1.bf16.xpose.msra.mxu0 0
        %1675 = vmatprep.subr.bf16.mxu0 0
        %1676 = vmatpush1.bf16.xpose.msra.mxu0 0
        %1677 = vmatprep.subr.bf16.mxu0 0
        %1678 = vmatpush1.bf16.xpose.msra.mxu0 0
        %1679 = vmatprep.mubr.bf16.mxu0 0
        %1680 = vmatmul.mubr.bf16.gmra.mrb[0].mxu0 %v1642
        %v1681 = vpop.f32.mrb[0].mxu0
        %v1682 = vadd.f32 0.0, %v1681
        %v1683 = vpop.f32.mrb[0].mxu0
        %v1684 = vpop.f32.mrb[0].mxu0
        %v1685 = vpop.f32.mrb[0].mxu0
        %1686 = vdwg.mxu0
        %v1687 = vsel %vm634, -1e+09, %v1682
        %v1688 = vsel %vm682, %v1687, -inf
        %1689 = vmax.xlane.f32.xlu0 %v1688
        %v1690 = vpop.xlane.xlu0 %1689
        %v1691 = vsub.f32 %v1687, %v1690
        %v1692 = vmul.f32 %v1691, 1.442695
        %v1693 = vpow.pop %v1692
        %v1694 = vsel %vm682, %v1693, 0.0
        %1695 = vadd.xlane.f32.xlu0 %v1694
        %v1696 = vpop.xlane.xlu0 %1695
        %v1697 = vrcp.pop %v1696
        %v1698 = vmul.f32 %v1693, %v1697
        %v1699 = vpack.c.bf16 %v1698, %v1698
        %1700 = vrot.lane.b32.xlu0 %v586, 64
        %v1701 = vpop.permute.xlu0 %1700
        %v1703 = vsel %vm682, %v1699, 0
        %v1706 = vsel %vm698, %v1701, 0
        %1708 = vmatprep.subr.bf16.mxu0 0
        %1709 = vmatpush1.bf16.msra.mxu0 %v1706
        %1710 = vmatprep.subr.bf16.mxu0 0
        %1711 = vmatpush1.bf16.msra.mxu0 0
        %1712 = vmatprep.subr.bf16.mxu0 0
        %1713 = vmatpush1.bf16.msra.mxu0 0
        %1714 = vmatprep.subr.bf16.mxu0 0
        %1715 = vmatpush1.bf16.msra.mxu0 0
        %1716 = vmatprep.subr.bf16.mxu0 0
        %1717 = vmatpush1.bf16.msra.mxu0 0
        %1718 = vmatprep.subr.bf16.mxu0 0
        %1719 = vmatpush1.bf16.msra.mxu0 0
        %1720 = vmatprep.subr.bf16.mxu0 0
        %1721 = vmatpush1.bf16.msra.mxu0 0
        %1722 = vmatprep.subr.bf16.mxu0 0
        %1723 = vmatpush1.bf16.msra.mxu0 0
        %1724 = vmatprep.subr.bf16.mxu0 0
        %1725 = vmatpush1.bf16.msra.mxu0 0
        %1726 = vmatprep.subr.bf16.mxu0 0
        %1727 = vmatpush1.bf16.msra.mxu0 0
        %1728 = vmatprep.subr.bf16.mxu0 0
        %1729 = vmatpush1.bf16.msra.mxu0 0
        %1730 = vmatprep.subr.bf16.mxu0 0
        %1731 = vmatpush1.bf16.msra.mxu0 0
        %1732 = vmatprep.subr.bf16.mxu0 0
        %1733 = vmatpush1.bf16.msra.mxu0 0
        %1734 = vmatprep.subr.bf16.mxu0 0
        %1735 = vmatpush1.bf16.msra.mxu0 0
        %1736 = vmatprep.subr.bf16.mxu0 0
        %1737 = vmatpush1.bf16.msra.mxu0 0
        %1738 = vmatprep.subr.bf16.mxu0 0
        %1739 = vmatpush1.bf16.msra.mxu0 0
        %1740 = vmatprep.mubr.bf16.mxu0 0
        %1741 = vmatmul.mubr.bf16.gmra.mrb[0].mxu0 %v1703
        %v1742 = vpop.f32.mrb[0].mxu0
        %v1743 = vadd.f32 0.0, %v1742
        %v1744 = vpop.f32.mrb[0].mxu0
        %v1745 = vpop.f32.mrb[0].mxu0
        %v1746 = vpop.f32.mrb[0].mxu0
        %1747 = vdwg.mxu0
        %v1748 = vpack.c.bf16 %v1743, %v1743
        %v1753 = vunpack.c.l.b16 %v611
        %v1754 = vunpack.c.l.b16 %v612
        %v1755 = vunpack.c.l.b16 %v613
        %v1756 = vunpack.c.l.b16 %v614
        %v1757 = vpack.c.b16 %v1754, %v1753
        %v1758 = vpack.c.b16 %v1756, %v1755
        %v1762 = vsel %vm403, %v1748, 0
        %1764 = vmatprep.subr.bf16.mxu0 0
        %1765 = vmatpush1.bf16.msra.mxu0 %v1757
        %1766 = vmatprep.subr.bf16.mxu0 0
        %1767 = vmatpush1.bf16.msra.mxu0 %v1758
        %1768 = vmatprep.subr.bf16.mxu0 0
        %1769 = vmatpush1.bf16.msra.mxu0 0
        %1770 = vmatprep.subr.bf16.mxu0 0
        %1771 = vmatpush1.bf16.msra.mxu0 0
        %1772 = vmatprep.subr.bf16.mxu0 0
        %1773 = vmatpush1.bf16.msra.mxu0 0
        %1774 = vmatprep.subr.bf16.mxu0 0
        %1775 = vmatpush1.bf16.msra.mxu0 0
        %1776 = vmatprep.subr.bf16.mxu0 0
        %1777 = vmatpush1.bf16.msra.mxu0 0
        %1778 = vmatprep.subr.bf16.mxu0 0
        %1779 = vmatpush1.bf16.msra.mxu0 0
        %1780 = vmatprep.subr.bf16.mxu0 0
        %1781 = vmatpush1.bf16.msra.mxu0 0
        %1782 = vmatprep.subr.bf16.mxu0 0
        %1783 = vmatpush1.bf16.msra.mxu0 0
        %1784 = vmatprep.subr.bf16.mxu0 0
        %1785 = vmatpush1.bf16.msra.mxu0 0
        %1786 = vmatprep.subr.bf16.mxu0 0
        %1787 = vmatpush1.bf16.msra.mxu0 0
        %1788 = vmatprep.subr.bf16.mxu0 0
        %1789 = vmatpush1.bf16.msra.mxu0 0
        %1790 = vmatprep.subr.bf16.mxu0 0
        %1791 = vmatpush1.bf16.msra.mxu0 0
        %1792 = vmatprep.subr.bf16.mxu0 0
        %1793 = vmatpush1.bf16.msra.mxu0 0
        %1794 = vmatprep.subr.bf16.mxu0 0
        %1795 = vmatpush1.bf16.msra.mxu0 0
        %1796 = vmatprep.mubr.bf16.mxu0 0
        %1797 = vmatmul.mubr.bf16.gmra.mrb[0].mxu0 %v1762
        %v1798 = vpop.f32.mrb[0].mxu0
        %v1799 = vadd.f32 0.0, %v1798
        %v1800 = vpop.f32.mrb[0].mxu0
        %v1801 = vpop.f32.mrb[0].mxu0
        %v1802 = vpop.f32.mrb[0].mxu0
        %1803 = vdwg.mxu0
        %v1804 = vadd.f32 %v1636, %v1799
        %1805 = vrot.lane.b32.xlu0 %v449, 32
        %v1806 = vpop.permute.xlu0 %1805
        %1807 = vrot.lane.b32.xlu0 %v519, 32
        %v1808 = vpop.permute.xlu0 %1807
        %v1810 = vsel %vm403, %v1806, 0
        %v1813 = vsel %vm403, %v1808, 0
        %1815 = vmatprep.subr.bf16.mxu0 0
        %1816 = vmatpush1.bf16.xpose.msra.mxu0 %v1813
        %1817 = vmatprep.subr.bf16.mxu0 0
        %1818 = vmatpush1.bf16.xpose.msra.mxu0 0
        %1819 = vmatprep.subr.bf16.mxu0 0
        %1820 = vmatpush1.bf16.xpose.msra.mxu0 0
        %1821 = vmatprep.subr.bf16.mxu0 0
        %1822 = vmatpush1.bf16.xpose.msra.mxu0 0
        %1823 = vmatprep.subr.bf16.mxu0 0
        %1824 = vmatpush1.bf16.xpose.msra.mxu0 0
        %1825 = vmatprep.subr.bf16.mxu0 0
        %1826 = vmatpush1.bf16.xpose.msra.mxu0 0
        %1827 = vmatprep.subr.bf16.mxu0 0
        %1828 = vmatpush1.bf16.xpose.msra.mxu0 0
        %1829 = vmatprep.subr.bf16.mxu0 0
        %1830 = vmatpush1.bf16.xpose.msra.mxu0 0
        %1831 = vmatprep.subr.bf16.mxu0 0
        %1832 = vmatpush1.bf16.xpose.msra.mxu0 0
        %1833 = vmatprep.subr.bf16.mxu0 0
        %1834 = vmatpush1.bf16.xpose.msra.mxu0 0
        %1835 = vmatprep.subr.bf16.mxu0 0
        %1836 = vmatpush1.bf16.xpose.msra.mxu0 0
        %1837 = vmatprep.subr.bf16.mxu0 0
        %1838 = vmatpush1.bf16.xpose.msra.mxu0 0
        %1839 = vmatprep.subr.bf16.mxu0 0
        %1840 = vmatpush1.bf16.xpose.msra.mxu0 0
        %1841 = vmatprep.subr.bf16.mxu0 0
        %1842 = vmatpush1.bf16.xpose.msra.mxu0 0
        %1843 = vmatprep.subr.bf16.mxu0 0
        %1844 = vmatpush1.bf16.xpose.msra.mxu0 0
        %1845 = vmatprep.subr.bf16.mxu0 0
        %1846 = vmatpush1.bf16.xpose.msra.mxu0 0
        %1847 = vmatprep.mubr.bf16.mxu0 0
        %1848 = vmatmul.mubr.bf16.gmra.mrb[0].mxu0 %v1810
        %v1849 = vpop.f32.mrb[0].mxu0
        %v1850 = vadd.f32 0.0, %v1849
        %v1851 = vpop.f32.mrb[0].mxu0
        %v1852 = vpop.f32.mrb[0].mxu0
        %v1853 = vpop.f32.mrb[0].mxu0
        %1854 = vdwg.mxu0
        %v1855 = vsel %vm634, -1e+09, %v1850
        %v1856 = vsel %vm682, %v1855, -inf
        %1857 = vmax.xlane.f32.xlu0 %v1856
        %v1858 = vpop.xlane.xlu0 %1857
        %v1859 = vsub.f32 %v1855, %v1858
        %v1860 = vmul.f32 %v1859, 1.442695
        %v1861 = vpow.pop %v1860
        %v1862 = vsel %vm682, %v1861, 0.0
        %1863 = vadd.xlane.f32.xlu0 %v1862
        %v1864 = vpop.xlane.xlu0 %1863
        %v1865 = vrcp.pop %v1864
        %v1866 = vmul.f32 %v1861, %v1865
        %v1867 = vpack.c.bf16 %v1866, %v1866
        %1868 = vrot.lane.b32.xlu0 %v586, 32
        %v1869 = vpop.permute.xlu0 %1868
        %v1871 = vsel %vm682, %v1867, 0
        %v1874 = vsel %vm698, %v1869, 0
        %1876 = vmatprep.subr.bf16.mxu0 0
        %1877 = vmatpush1.bf16.msra.mxu0 %v1874
        %1878 = vmatprep.subr.bf16.mxu0 0
        %1879 = vmatpush1.bf16.msra.mxu0 0
        %1880 = vmatprep.subr.bf16.mxu0 0
        %1881 = vmatpush1.bf16.msra.mxu0 0
        %1882 = vmatprep.subr.bf16.mxu0 0
        %1883 = vmatpush1.bf16.msra.mxu0 0
        %1884 = vmatprep.subr.bf16.mxu0 0
        %1885 = vmatpush1.bf16.msra.mxu0 0
        %1886 = vmatprep.subr.bf16.mxu0 0
        %1887 = vmatpush1.bf16.msra.mxu0 0
        %1888 = vmatprep.subr.bf16.mxu0 0
        %1889 = vmatpush1.bf16.msra.mxu0 0
        %1890 = vmatprep.subr.bf16.mxu0 0
        %1891 = vmatpush1.bf16.msra.mxu0 0
        %1892 = vmatprep.subr.bf16.mxu0 0
        %1893 = vmatpush1.bf16.msra.mxu0 0
        %1894 = vmatprep.subr.bf16.mxu0 0
        %1895 = vmatpush1.bf16.msra.mxu0 0
        %1896 = vmatprep.subr.bf16.mxu0 0
        %1897 = vmatpush1.bf16.msra.mxu0 0
        %1898 = vmatprep.subr.bf16.mxu0 0
        %1899 = vmatpush1.bf16.msra.mxu0 0
        %1900 = vmatprep.subr.bf16.mxu0 0
        %1901 = vmatpush1.bf16.msra.mxu0 0
        %1902 = vmatprep.subr.bf16.mxu0 0
        %1903 = vmatpush1.bf16.msra.mxu0 0
        %1904 = vmatprep.subr.bf16.mxu0 0
        %1905 = vmatpush1.bf16.msra.mxu0 0
        %1906 = vmatprep.subr.bf16.mxu0 0
        %1907 = vmatpush1.bf16.msra.mxu0 0
        %1908 = vmatprep.mubr.bf16.mxu0 0
        %1909 = vmatmul.mubr.bf16.gmra.mrb[0].mxu0 %v1871
        %v1910 = vpop.f32.mrb[0].mxu0
        %v1911 = vadd.f32 0.0, %v1910
        %v1912 = vpop.f32.mrb[0].mxu0
        %v1913 = vpop.f32.mrb[0].mxu0
        %v1914 = vpop.f32.mrb[0].mxu0
        %1915 = vdwg.mxu0
        %v1916 = vpack.c.bf16 %v1911, %v1911
        %v1921 = vunpack.c.l.b16 %v615
        %v1922 = vunpack.c.l.b16 %v616
        %v1923 = vunpack.c.l.b16 %v617
        %v1924 = vunpack.c.l.b16 %v618
        %v1925 = vpack.c.b16 %v1922, %v1921
        %v1926 = vpack.c.b16 %v1924, %v1923
        %v1930 = vsel %vm403, %v1916, 0
        %1932 = vmatprep.subr.bf16.mxu0 0
        %1933 = vmatpush1.bf16.msra.mxu0 %v1925
        %1934 = vmatprep.subr.bf16.mxu0 0
        %1935 = vmatpush1.bf16.msra.mxu0 %v1926
        %1936 = vmatprep.subr.bf16.mxu0 0
        %1937 = vmatpush1.bf16.msra.mxu0 0
        %1938 = vmatprep.subr.bf16.mxu0 0
        %1939 = vmatpush1.bf16.msra.mxu0 0
        %1940 = vmatprep.subr.bf16.mxu0 0
        %1941 = vmatpush1.bf16.msra.mxu0 0
        %1942 = vmatprep.subr.bf16.mxu0 0
        %1943 = vmatpush1.bf16.msra.mxu0 0
        %1944 = vmatprep.subr.bf16.mxu0 0
        %1945 = vmatpush1.bf16.msra.mxu0 0
        %1946 = vmatprep.subr.bf16.mxu0 0
        %1947 = vmatpush1.bf16.msra.mxu0 0
        %1948 = vmatprep.subr.bf16.mxu0 0
        %1949 = vmatpush1.bf16.msra.mxu0 0
        %1950 = vmatprep.subr.bf16.mxu0 0
        %1951 = vmatpush1.bf16.msra.mxu0 0
        %1952 = vmatprep.subr.bf16.mxu0 0
        %1953 = vmatpush1.bf16.msra.mxu0 0
        %1954 = vmatprep.subr.bf16.mxu0 0
        %1955 = vmatpush1.bf16.msra.mxu0 0
        %1956 = vmatprep.subr.bf16.mxu0 0
        %1957 = vmatpush1.bf16.msra.mxu0 0
        %1958 = vmatprep.subr.bf16.mxu0 0
        %1959 = vmatpush1.bf16.msra.mxu0 0
        %1960 = vmatprep.subr.bf16.mxu0 0
        %1961 = vmatpush1.bf16.msra.mxu0 0
        %1962 = vmatprep.subr.bf16.mxu0 0
        %1963 = vmatpush1.bf16.msra.mxu0 0
        %1964 = vmatprep.mubr.bf16.mxu0 0
        %1965 = vmatmul.mubr.bf16.gmra.mrb[0].mxu0 %v1930
        %v1966 = vpop.f32.mrb[0].mxu0
        %v1967 = vadd.f32 0.0, %v1966
        %v1968 = vpop.f32.mrb[0].mxu0
        %v1969 = vpop.f32.mrb[0].mxu0
        %v1970 = vpop.f32.mrb[0].mxu0
        %1971 = vdwg.mxu0
        %v1972 = vadd.f32 %v1804, %v1967
        %v1974 = vlaneseq
        %v1975 = vshrl.u32 %v1974, 7
        %v1976 = vsub.s32 0, %v1975
        %v1977 = vrot.slane %v619, %v1976
        %v1979 = vadd.f32 %v1972, %v1977
        %1980 = vst.msk [vmem:[%s360] sm:$0xff] %vm403, %v1979
        %s1981 = sand.u32 %s240, 1
        %s1982 = scalar_lea.sflag [#allocation3], %s1981
        %s1983 = sand.u32 %s240, 1
        %s1984 = smul.addr %s1983, 8
        %s1985 = scalar_lea.vmem [#allocation2], %s1984
        // Predicated region
        $region57: #{tpu_custom_call.1} parent=55 // pred_check
          %p1986 = pneg %p250
        $region58: #{tpu_custom_call.1} parent=55 // pred_check_branch
          %1988 = sbr.rel (%p1986) target = $region60
        $region59: #{tpu_custom_call.1} parent=55 // pred_region
          %s1990 = ssub.s32 128, 128
          %1991 = vsyncadd %s1982, %s1990
          %s1992 = smul.addr %s23, 128
          %s1993 = scalar_lea.hbm %s9, %s1992
          %s1995 = sshll.u32 %s1985, 4
          %s1996 = int_to_ptr.vmem [resolvable:$true] %s1995
          %1998 = dma.vmem_to_hbm [thread:$0]  %s1996, 128, %s1993, %s1982
        $region60: #{tpu_custom_call.1} parent=55 // pred_fallthru
          _
      $region56: #{tpu_custom_call.1} parent=5 // pred_fallthru
        _
      %p1999 = scmp.le.s32.totalorder 2, %s18
      // Predicated region
      $region61: #{tpu_custom_call.1} parent=5 // pred_check
        %p2000 = pneg %p1999
      $region62: #{tpu_custom_call.1} parent=5 // pred_check_branch
        %2002 = sbr.rel (%p2000) target = $region64
      $region63: #{tpu_custom_call.1} parent=5 // pred_region
        %s2003 = ssub.s32 %s18, 2
        // Predicated region
        $region65: #{tpu_custom_call.1} parent=63 // pred_check
          %p2004 = pneg %p256
        $region66: #{tpu_custom_call.1} parent=63 // pred_check_branch
          %2006 = sbr.rel (%p2004) target = $region68
        $region67: #{tpu_custom_call.1} parent=63 // pred_region
          %s2007 = sand.u32 %s241, 1
          %s2008 = scalar_lea.sflag [#allocation3], %s2007
          %s2009 = sand.u32 %s241, 1
          %s2010 = smul.addr %s2009, 8
          %s2011 = scalar_lea.vmem [#allocation2], %s2010
          %2012 = dma.done %s2008, 128
        $region68: #{tpu_custom_call.1} parent=63 // pred_fallthru
          _
      $region64: #{tpu_custom_call.1} parent=5 // pred_fallthru
        _
    $region6: #{tpu_custom_call.1} parent=1 // loop_footer
      %s22 = sadd.s32 1, %s18
    $region7: #{tpu_custom_call.1} parent=1 // loop_footer_branch
      %17 = sbr.rel target = $region3
    $region8: #{tpu_custom_call.1} parent=1 // loop_exit
      _
    %2013 = vsyncpa [#allocation3], 1
    %s2014 = scalar_lea.sflag [#allocation3], 1
    %2015 = vsyncpa %s2014, 1

</llo_original>
